<compile_context>
chip_gen: v7x
topology: tpu7x:2x2x1
jax: 0.10.0
libtpu: 0.0.40
codegen_flags: <defaults>
</compile_context>

<pallas_src>
import numpy as np
import jax
import jax.numpy as jnp
from jax.experimental import pallas as pl
from jax.experimental.pallas import tpu as pltpu

TOTAL_STRIDE = 8


def _round_up(x, m):
    return (x + m - 1) // m * m


# ----------------------------------------------------------------------------- kernel
def make_siamfcpp_head_kernel(WP, widths):
    N0, N1, N2, N3 = widths               # lane widths: input, conv1, conv2, conv3 outputs
    layer_widths = (N1, N2, N3)

    def kernel(x_ref, wt_ref, bt_ref, wh_ref, bh_ref, fm_ref, out_ref):
        # x_ref: (Ct, N0) f32, cls channels stacked on top of bbox channels.
        # wt_ref: (3, Ct, 9*Ct) bf16 block-diagonal fused tower weights.
        # bt_ref: (3, Ct, 1) f32 biases.  wh_ref: (6, Ct) bf16.  bh_ref: (6, 1) f32.
        x = x_ref[...].astype(jnp.bfloat16)                       # (Ct, N0)
        for i, n_out in enumerate(layer_widths):
            # im2col: all 9 taps (dy, dx) as lane-shifted slices, concat along channels.
            slab = jnp.concatenate(
                [x[:, dy * WP + dx: dy * WP + dx + n_out]
                 for dy in range(3) for dx in range(3)], axis=0)  # (9*Ct, n_out) bf16
            y = jnp.dot(wt_ref[i], slab, preferred_element_type=jnp.float32)
            y = jnp.maximum(y + bt_ref[i], 0.0)                   # conv + bias + ReLU, f32
            x = y.astype(jnp.bfloat16)

        # Fused 1x1 heads: rows = [cls, ctr, off0, off1, off2, off3].
        h = jnp.dot(wh_ref[...], x, preferred_element_type=jnp.float32) + bh_ref[...]
        out_ref[0:2, :] = h[0:2, :]                               # cls / ctr scores

        # si/bi already folded into wh/bh.  Clamp keeps garbage (cropped) columns finite.
        off = jnp.exp(jnp.minimum(h[2:6, :], 80.0)) + jnp.float32(TOTAL_STRIDE)
        row = jax.lax.broadcasted_iota(jnp.int32, (4, 1), 0)
        sign = jnp.where(row < 2, jnp.float32(-1.0), jnp.float32(1.0))
        out_ref[2:6, :] = fm_ref[...] + sign * off                # [x0, y0, x1, y1]

    return kernel


# ----------------------------------------------------------------------------- wrapper
def siamfcpp_head_forward(c_out, r_out, params, fm_ctr, si, bi):
    """c_out, r_out: (B, H, W, C) float32 NHWC.  Returns (cls_score, ctr_score, bbox)."""
    B, H, W, Cc = c_out.shape
    Cb = r_out.shape[-1]
    Ct = Cc + Cb
    S = H - 6                               # three VALID 3x3 convs
    WP = _round_up(W, 8)                    # padded row stride (23 -> 24)
    HP = H + 1                              # one extra zero row of slack
    N0 = HP * WP
    KSH = 2 * WP + 2                        # largest tap shift (dy = dx = 2)
    N3 = S * WP                             # final width: reshapes to (S, WP) directly
    N2 = _round_up(N3 + KSH, 8)
    N1 = _round_up(N2 + KSH, 8)
    assert S <= WP and N1 + KSH <= N0

    kernel = make_siamfcpp_head_kernel(WP, (N0, N1, N2, N3))

    def to_cn(x):                           # NHWC -> channel-major (B, C, HP*WP), zero padded
        x = jnp.transpose(x, (0, 3, 1, 2))
        x = jnp.pad(x, ((0, 0), (0, 0), (0, HP - H), (0, WP - W)))
        return x.reshape(x.shape[0], x.shape[1], N0)

    # Stack both towers' inputs along the channel (sublane) axis.
    x_all = jnp.concatenate([to_cn(c_out), to_cn(r_out)], axis=1)          # (B, Ct, N0)

    # Block-diagonal fused tower weights: (layer, Cout=Ct, 9*Ct), bf16.
    wc, wr = params["wc"], params["wr"]                                    # (3,3,3,C,C) HWIO
    L = wc.shape[0]
    top = jnp.concatenate([wc, jnp.zeros((L, 3, 3, Cc, Cb), jnp.float32)], axis=4)
    bot = jnp.concatenate([jnp.zeros((L, 3, 3, Cb, Cc), jnp.float32), wr], axis=4)
    wt = jnp.concatenate([top, bot], axis=3)                               # (L,3,3,Ct,Ct)
    wt = jnp.transpose(wt, (0, 4, 1, 2, 3)).reshape(L, Ct, 9 * Ct)
    wt = wt.astype(jnp.bfloat16)
    bt = jnp.transpose(jnp.concatenate([params["bc"], params["br"]], axis=2),
                       (0, 2, 1))                                          # (3, Ct, 1) f32

    # Fused 1x1 heads (rows = [cls, ctr, off0..3]); si/bi folded into the offsets branch.
    woff = params["woff"] * jnp.float32(si)                                # (Cb, 4)
    boff = params["boff"] * jnp.float32(si) + jnp.float32(bi)              # (1, 4)
    wh = jnp.concatenate(
        [jnp.concatenate([params["wsc"].T, jnp.zeros((2, Cb), jnp.float32)], axis=1),
         jnp.concatenate([jnp.zeros((4, Cc), jnp.float32), woff.T], axis=1)],
        axis=0).astype(jnp.bfloat16)                                       # (6, Ct) bf16
    bh = jnp.concatenate([params["bsc"].T, boff.T], axis=0)                # (6, 1) f32

    # fm_ctr scattered onto the padded flat grid; rows = [x, y, x, y].
    fm2 = jnp.pad(fm_ctr.reshape(S, S, 2),
                  ((0, 0), (0, WP - S), (0, 0))).reshape(N3, 2).T          # (2, N3)
    fm4 = jnp.concatenate([fm2, fm2], axis=0)                              # (4, N3)

    def full(a):
        # constant block index -> DMA'd once, not re-fetched per batch step
        return pl.BlockSpec(a.shape, lambda b, n=a.ndim: (0,) * n)

    grid_spec = pltpu.PrefetchScalarGridSpec(
        num_scalar_prefetch=0,
        grid=(B,),
        in_specs=[
            pl.BlockSpec((None, Ct, N0), lambda b: (b, 0, 0)),   # stacked features (Ct, N0)
            full(wt), full(bt), full(wh), full(bh), full(fm4),
        ],
        out_specs=pl.BlockSpec((None, 6, N3), lambda b: (b, 0, 0)),
    )
    out = pl.pallas_call(
        kernel,
        out_shape=jax.ShapeDtypeStruct((B, 6, N3), jnp.float32),
        grid_spec=grid_spec,
        compiler_params=pltpu.CompilerParams(dimension_semantics=("parallel",)),
    )(x_all, wt, bt, wh, bh, fm4)

    # Crop the valid S x S grid and split channels (pure layout work; fused by XLA).
    out = out.reshape(B, 6, S, WP)[:, :, :, :S].reshape(B, 6, S * S)
    out = jnp.transpose(out, (0, 2, 1))                          # (B, S*S, 6)
    return out[..., 0:1], out[..., 1:2], out[..., 2:6]


# ----------------------------------------------------------------------------- glue: params / fm_ctr / reference
def get_fm_ctr(score_size, x_size, total_stride):
    score_offset = (x_size - 1 - (score_size - 1) * total_stride) // 2
    xs = np.arange(score_size, dtype=np.float32)
    ys = np.arange(score_size, dtype=np.float32)
    xx, yy = np.meshgrid(xs, ys)                     # xx[h, w] = w, yy[h, w] = h
    xy = np.stack([xx, yy], axis=-1)                 # (S, S, 2) -> [x, y]
    ctr = score_offset + xy * total_stride
    return jnp.asarray(ctr.reshape(score_size * score_size, 2), jnp.float32)


def init_params(key, c_cls, c_bb):
    std = 1e-4
    pi = 0.01
    bv = float(-np.log((1.0 - pi) / pi))
    bn_scale = np.float32(1.0 / np.sqrt(1.0 + 1e-5))   # eval-mode BN fold (gamma=1, beta=0, mu=0, var=1)

    keys = iter(jax.random.split(key, 24))

    def conv_init(cin, cout, k):
        w = jax.random.normal(next(keys), (k, k, cin, cout), jnp.float32) * std
        bound = 1.0 / np.sqrt(cin * k * k)
        b = jax.random.uniform(next(keys), (cout,), jnp.float32, -bound, bound)
        return w, b

    def tower(c):
        ws, bs = [], []
        for i in range(3):
            w, b = conv_init(c, c, 3)
            if i == 2:                                # third conv has BN
                w, b = w * bn_scale, b * bn_scale
            ws.append(w)
            bs.append(b)
        return jnp.stack(ws), jnp.stack(bs).reshape(3, 1, c)

    wc, bc = tower(c_cls)
    wr, br = tower(c_bb)

    # 1x1 heads (conv_bn_relu has_bn defaults True -> fold eval-mode BN)
    w_cls, _ = conv_init(c_cls, 1, 1)
    b_cls = jnp.full((1,), bv, jnp.float32)           # cls_score bias = -log((1-pi)/pi)
    w_ctr, b_ctr = conv_init(c_cls, 1, 1)
    w_off, b_off = conv_init(c_bb, 4, 1)

    wsc = jnp.concatenate([w_cls.reshape(c_cls, 1), w_ctr.reshape(c_cls, 1)], axis=1) * bn_scale
    bsc = jnp.concatenate([b_cls, b_ctr]).reshape(1, 2) * bn_scale
    woff = w_off.reshape(c_bb, 4) * bn_scale
    boff = b_off.reshape(1, 4) * bn_scale

    return dict(wc=wc, bc=bc, wr=wr, br=br, wsc=wsc, bsc=bsc, woff=woff, boff=boff)


def reference_forward(c_out, r_out, params, fm_ctr, si, bi):
    P = jax.lax.Precision.HIGHEST

    def conv_valid(x, w, b):
        y = jax.lax.conv_general_dilated(
            x, w, (1, 1), "VALID",
            dimension_numbers=("NHWC", "HWIO", "NHWC"), precision=P)
        return y + b.reshape(1, 1, 1, -1)

    cls, box = c_out, r_out
    for i in range(3):
        cls = jax.nn.relu(conv_valid(cls, params["wc"][i], params["bc"][i, 0]))
        box = jax.nn.relu(conv_valid(box, params["wr"][i], params["br"][i, 0]))
    B, S, _, _ = cls.shape
    scores = jnp.einsum("bhwc,ck->bhwk", cls, params["wsc"],
                        precision=P).reshape(B, S * S, 2) + params["bsc"]
    cls_score, ctr_score = scores[..., 0:1], scores[..., 1:2]
    off = jnp.einsum("bhwc,ck->bhwk", box, params["woff"],
                     precision=P).reshape(B, S * S, 4) + params["boff"]
    off = jnp.exp(si * off + bi) + TOTAL_STRIDE
    xy0 = fm_ctr[None] - off[..., 0:2]
    xy1 = fm_ctr[None] + off[..., 2:4]
    return cls_score, ctr_score, jnp.concatenate([xy0, xy1], axis=-1)


# ----------------------------------------------------------------------------- main
if __name__ == "__main__":
    key = jax.random.PRNGKey(0)
    B = 2
    C_CLS = 16          # cfg.MODEL.TRACK_HEAD.CLS_CHANNEL (small synthetic)
    C_BB = 16           # cfg.MODEL.TRACK_HEAD.BBOX_CHANNEL (small synthetic)
    SCORE_SIZE = 17
    X_SIZE = 303
    H = W = SCORE_SIZE + 6        # three VALID 3x3 convs: 23 -> 17

    k_p, k_c, k_r = jax.random.split(key, 3)
    params = init_params(k_p, C_CLS, C_BB)
    fm_ctr = get_fm_ctr(SCORE_SIZE, X_SIZE, TOTAL_STRIDE)

    c_out = jax.random.normal(k_c, (B, H, W, C_CLS), jnp.float32)   # NHWC (== NCHW [2,16,23,23] transposed)
    r_out = jax.random.normal(k_r, (B, H, W, C_BB), jnp.float32)

    si, bi = 1.0, 0.0   # self.si, self.bi parameters

    outs = siamfcpp_head_forward(c_out, r_out, params, fm_ctr, si, bi)
    cls_score, ctr_score, bbox = jax.block_until_ready(outs)

    ref_cls, ref_ctr, ref_bbox = reference_forward(c_out, r_out, params, fm_ctr, si, bi)
    np.testing.assert_allclose(np.asarray(cls_score), np.asarray(ref_cls), rtol=5e-3, atol=5e-3)
    np.testing.assert_allclose(np.asarray(ctr_score), np.asarray(ref_ctr), rtol=5e-3, atol=5e-3)
    np.testing.assert_allclose(np.asarray(bbox), np.asarray(ref_bbox), rtol=5e-3, atol=5e-3)

    print("KERNEL_OK")
</pallas_src>

<mosaic_0001>
module attributes {stable_mosaic.version = 11 : i64} {
  func.func @kernel(%arg0: i32, %arg1: memref<1x32x576xf32, #tpu.memory_space<vmem>>, %arg2: memref<3x32x288xbf16, #tpu.memory_space<vmem>>, %arg3: memref<3x32x1xf32, #tpu.memory_space<vmem>>, %arg4: memref<6x32xbf16, #tpu.memory_space<vmem>>, %arg5: memref<6x1xf32, #tpu.memory_space<vmem>>, %arg6: memref<4x408xf32, #tpu.memory_space<vmem>>, %arg7: memref<1x6x408xf32, #tpu.memory_space<vmem>>) attributes {dimension_semantics = [#tpu.dimension_semantics<parallel>], iteration_bounds = array<i64: 2>, scalar_prefetch = 0 : i64, scratch_operands = 0 : i64, tpu.core_type = #tpu.core_type<tc>, window_params = [{transform_indices = @transform_0, window_bounds = array<i64: 1, 32, 576>}, {pipeline_mode = #tpu.pipeline_mode<synchronous>, transform_indices = @transform_1, window_bounds = array<i64: 3, 32, 288>}, {pipeline_mode = #tpu.pipeline_mode<synchronous>, transform_indices = @transform_2, window_bounds = array<i64: 3, 32, 1>}, {pipeline_mode = #tpu.pipeline_mode<synchronous>, transform_indices = @transform_3, window_bounds = array<i64: 6, 32>}, {pipeline_mode = #tpu.pipeline_mode<synchronous>, transform_indices = @transform_4, window_bounds = array<i64: 6, 1>}, {pipeline_mode = #tpu.pipeline_mode<synchronous>, transform_indices = @transform_5, window_bounds = array<i64: 4, 408>}, {transform_indices = @transform_6, window_bounds = array<i64: 1, 6, 408>}]} {
    %c0 = arith.constant 0 : index
    %c0_0 = arith.constant 0 : index
    %c0_1 = arith.constant 0 : index
    %0 = vector.load %arg1[%c0, %c0_0, %c0_1] : memref<1x32x576xf32, #tpu.memory_space<vmem>>, vector<1x32x576xf32>
    %1 = vector.shape_cast %0 : vector<1x32x576xf32> to vector<32x576xf32>
    %2 = arith.truncf %1 : vector<32x576xf32> to vector<32x576xbf16>
    %3 = vector.extract_strided_slice %2 {offsets = [0, 0], sizes = [32, 520], strides = [1, 1]} : vector<32x576xbf16> to vector<32x520xbf16>
    %4 = vector.extract_strided_slice %2 {offsets = [0, 1], sizes = [32, 520], strides = [1, 1]} : vector<32x576xbf16> to vector<32x520xbf16>
    %5 = vector.extract_strided_slice %2 {offsets = [0, 2], sizes = [32, 520], strides = [1, 1]} : vector<32x576xbf16> to vector<32x520xbf16>
    %6 = vector.extract_strided_slice %2 {offsets = [0, 24], sizes = [32, 520], strides = [1, 1]} : vector<32x576xbf16> to vector<32x520xbf16>
    %7 = vector.extract_strided_slice %2 {offsets = [0, 25], sizes = [32, 520], strides = [1, 1]} : vector<32x576xbf16> to vector<32x520xbf16>
    %8 = vector.extract_strided_slice %2 {offsets = [0, 26], sizes = [32, 520], strides = [1, 1]} : vector<32x576xbf16> to vector<32x520xbf16>
    %9 = vector.extract_strided_slice %2 {offsets = [0, 48], sizes = [32, 520], strides = [1, 1]} : vector<32x576xbf16> to vector<32x520xbf16>
    %10 = vector.extract_strided_slice %2 {offsets = [0, 49], sizes = [32, 520], strides = [1, 1]} : vector<32x576xbf16> to vector<32x520xbf16>
    %11 = vector.extract_strided_slice %2 {offsets = [0, 50], sizes = [32, 520], strides = [1, 1]} : vector<32x576xbf16> to vector<32x520xbf16>
    %12 = tpu.concatenate %3, %4, %5, %6, %7, %8, %9, %10, %11 in 0 : vector<32x520xbf16>, vector<32x520xbf16>, vector<32x520xbf16>, vector<32x520xbf16>, vector<32x520xbf16>, vector<32x520xbf16>, vector<32x520xbf16>, vector<32x520xbf16>, vector<32x520xbf16> -> vector<288x520xbf16>
    %c0_2 = arith.constant 0 : index
    %c0_3 = arith.constant 0 : index
    %c0_4 = arith.constant 0 : index
    %13 = vector.load %arg2[%c0_2, %c0_3, %c0_4] : memref<3x32x288xbf16, #tpu.memory_space<vmem>>, vector<1x32x288xbf16>
    %14 = vector.shape_cast %13 : vector<1x32x288xbf16> to vector<32x288xbf16>
    %cst = arith.constant dense<0.000000e+00> : vector<32x520xf32>
    %15 = tpu.matmul %14, %12, %cst {dimension_numbers = #tpu.dot_dimension_numbers<[1], [0], [0], [1], [0, 0, 1, 1], [], []>} : vector<32x288xbf16>, vector<288x520xbf16>, vector<32x520xf32> -> vector<32x520xf32>
    %c0_5 = arith.constant 0 : index
    %c0_6 = arith.constant 0 : index
    %c0_7 = arith.constant 0 : index
    %16 = vector.load %arg3[%c0_5, %c0_6, %c0_7] : memref<3x32x1xf32, #tpu.memory_space<vmem>>, vector<1x32x1xf32>
    %17 = vector.shape_cast %16 : vector<1x32x1xf32> to vector<32x1xf32>
    %18 = vector.broadcast %17 : vector<32x1xf32> to vector<32x520xf32>
    %19 = arith.addf %15, %18 : vector<32x520xf32>
    %cst_8 = arith.constant 0.000000e+00 : f32
    %20 = vector.broadcast %cst_8 : f32 to vector<32x520xf32>
    %21 = arith.maximumf %19, %20 : vector<32x520xf32>
    %22 = arith.truncf %21 : vector<32x520xf32> to vector<32x520xbf16>
    %23 = vector.extract_strided_slice %22 {offsets = [0, 0], sizes = [32, 464], strides = [1, 1]} : vector<32x520xbf16> to vector<32x464xbf16>
    %24 = vector.extract_strided_slice %22 {offsets = [0, 1], sizes = [32, 464], strides = [1, 1]} : vector<32x520xbf16> to vector<32x464xbf16>
    %25 = vector.extract_strided_slice %22 {offsets = [0, 2], sizes = [32, 464], strides = [1, 1]} : vector<32x520xbf16> to vector<32x464xbf16>
    %26 = vector.extract_strided_slice %22 {offsets = [0, 24], sizes = [32, 464], strides = [1, 1]} : vector<32x520xbf16> to vector<32x464xbf16>
    %27 = vector.extract_strided_slice %22 {offsets = [0, 25], sizes = [32, 464], strides = [1, 1]} : vector<32x520xbf16> to vector<32x464xbf16>
    %28 = vector.extract_strided_slice %22 {offsets = [0, 26], sizes = [32, 464], strides = [1, 1]} : vector<32x520xbf16> to vector<32x464xbf16>
    %29 = vector.extract_strided_slice %22 {offsets = [0, 48], sizes = [32, 464], strides = [1, 1]} : vector<32x520xbf16> to vector<32x464xbf16>
    %30 = vector.extract_strided_slice %22 {offsets = [0, 49], sizes = [32, 464], strides = [1, 1]} : vector<32x520xbf16> to vector<32x464xbf16>
    %31 = vector.extract_strided_slice %22 {offsets = [0, 50], sizes = [32, 464], strides = [1, 1]} : vector<32x520xbf16> to vector<32x464xbf16>
    %32 = tpu.concatenate %23, %24, %25, %26, %27, %28, %29, %30, %31 in 0 : vector<32x464xbf16>, vector<32x464xbf16>, vector<32x464xbf16>, vector<32x464xbf16>, vector<32x464xbf16>, vector<32x464xbf16>, vector<32x464xbf16>, vector<32x464xbf16>, vector<32x464xbf16> -> vector<288x464xbf16>
    %c1 = arith.constant 1 : index
    %c0_9 = arith.constant 0 : index
    %c0_10 = arith.constant 0 : index
    %33 = vector.load %arg2[%c1, %c0_9, %c0_10] : memref<3x32x288xbf16, #tpu.memory_space<vmem>>, vector<1x32x288xbf16>
    %34 = vector.shape_cast %33 : vector<1x32x288xbf16> to vector<32x288xbf16>
    %cst_11 = arith.constant dense<0.000000e+00> : vector<32x464xf32>
    %35 = tpu.matmul %34, %32, %cst_11 {dimension_numbers = #tpu.dot_dimension_numbers<[1], [0], [0], [1], [0, 0, 1, 1], [], []>} : vector<32x288xbf16>, vector<288x464xbf16>, vector<32x464xf32> -> vector<32x464xf32>
    %c1_12 = arith.constant 1 : index
    %c0_13 = arith.constant 0 : index
    %c0_14 = arith.constant 0 : index
    %36 = vector.load %arg3[%c1_12, %c0_13, %c0_14] : memref<3x32x1xf32, #tpu.memory_space<vmem>>, vector<1x32x1xf32>
    %37 = vector.shape_cast %36 : vector<1x32x1xf32> to vector<32x1xf32>
    %38 = vector.broadcast %37 : vector<32x1xf32> to vector<32x464xf32>
    %39 = arith.addf %35, %38 : vector<32x464xf32>
    %cst_15 = arith.constant 0.000000e+00 : f32
    %40 = vector.broadcast %cst_15 : f32 to vector<32x464xf32>
    %41 = arith.maximumf %39, %40 : vector<32x464xf32>
    %42 = arith.truncf %41 : vector<32x464xf32> to vector<32x464xbf16>
    %43 = vector.extract_strided_slice %42 {offsets = [0, 0], sizes = [32, 408], strides = [1, 1]} : vector<32x464xbf16> to vector<32x408xbf16>
    %44 = vector.extract_strided_slice %42 {offsets = [0, 1], sizes = [32, 408], strides = [1, 1]} : vector<32x464xbf16> to vector<32x408xbf16>
    %45 = vector.extract_strided_slice %42 {offsets = [0, 2], sizes = [32, 408], strides = [1, 1]} : vector<32x464xbf16> to vector<32x408xbf16>
    %46 = vector.extract_strided_slice %42 {offsets = [0, 24], sizes = [32, 408], strides = [1, 1]} : vector<32x464xbf16> to vector<32x408xbf16>
    %47 = vector.extract_strided_slice %42 {offsets = [0, 25], sizes = [32, 408], strides = [1, 1]} : vector<32x464xbf16> to vector<32x408xbf16>
    %48 = vector.extract_strided_slice %42 {offsets = [0, 26], sizes = [32, 408], strides = [1, 1]} : vector<32x464xbf16> to vector<32x408xbf16>
    %49 = vector.extract_strided_slice %42 {offsets = [0, 48], sizes = [32, 408], strides = [1, 1]} : vector<32x464xbf16> to vector<32x408xbf16>
    %50 = vector.extract_strided_slice %42 {offsets = [0, 49], sizes = [32, 408], strides = [1, 1]} : vector<32x464xbf16> to vector<32x408xbf16>
    %51 = vector.extract_strided_slice %42 {offsets = [0, 50], sizes = [32, 408], strides = [1, 1]} : vector<32x464xbf16> to vector<32x408xbf16>
    %52 = tpu.concatenate %43, %44, %45, %46, %47, %48, %49, %50, %51 in 0 : vector<32x408xbf16>, vector<32x408xbf16>, vector<32x408xbf16>, vector<32x408xbf16>, vector<32x408xbf16>, vector<32x408xbf16>, vector<32x408xbf16>, vector<32x408xbf16>, vector<32x408xbf16> -> vector<288x408xbf16>
    %c2 = arith.constant 2 : index
    %c0_16 = arith.constant 0 : index
    %c0_17 = arith.constant 0 : index
    %53 = vector.load %arg2[%c2, %c0_16, %c0_17] : memref<3x32x288xbf16, #tpu.memory_space<vmem>>, vector<1x32x288xbf16>
    %54 = vector.shape_cast %53 : vector<1x32x288xbf16> to vector<32x288xbf16>
    %cst_18 = arith.constant dense<0.000000e+00> : vector<32x408xf32>
    %55 = tpu.matmul %54, %52, %cst_18 {dimension_numbers = #tpu.dot_dimension_numbers<[1], [0], [0], [1], [0, 0, 1, 1], [], []>} : vector<32x288xbf16>, vector<288x408xbf16>, vector<32x408xf32> -> vector<32x408xf32>
    %c2_19 = arith.constant 2 : index
    %c0_20 = arith.constant 0 : index
    %c0_21 = arith.constant 0 : index
    %56 = vector.load %arg3[%c2_19, %c0_20, %c0_21] : memref<3x32x1xf32, #tpu.memory_space<vmem>>, vector<1x32x1xf32>
    %57 = vector.shape_cast %56 : vector<1x32x1xf32> to vector<32x1xf32>
    %58 = vector.broadcast %57 : vector<32x1xf32> to vector<32x408xf32>
    %59 = arith.addf %55, %58 : vector<32x408xf32>
    %cst_22 = arith.constant 0.000000e+00 : f32
    %60 = vector.broadcast %cst_22 : f32 to vector<32x408xf32>
    %61 = arith.maximumf %59, %60 : vector<32x408xf32>
    %62 = arith.truncf %61 : vector<32x408xf32> to vector<32x408xbf16>
    %c0_23 = arith.constant 0 : index
    %c0_24 = arith.constant 0 : index
    %63 = vector.load %arg4[%c0_23, %c0_24] : memref<6x32xbf16, #tpu.memory_space<vmem>>, vector<6x32xbf16>
    %cst_25 = arith.constant dense<0.000000e+00> : vector<6x408xf32>
    %64 = tpu.matmul %63, %62, %cst_25 {dimension_numbers = #tpu.dot_dimension_numbers<[1], [0], [0], [1], [0, 0, 1, 1], [], []>} : vector<6x32xbf16>, vector<32x408xbf16>, vector<6x408xf32> -> vector<6x408xf32>
    %c0_26 = arith.constant 0 : index
    %c0_27 = arith.constant 0 : index
    %65 = vector.load %arg5[%c0_26, %c0_27] : memref<6x1xf32, #tpu.memory_space<vmem>>, vector<6x1xf32>
    %66 = vector.broadcast %65 : vector<6x1xf32> to vector<6x408xf32>
    %67 = arith.addf %64, %66 : vector<6x408xf32>
    %68 = vector.extract_strided_slice %67 {offsets = [0, 0], sizes = [2, 408], strides = [1, 1]} : vector<6x408xf32> to vector<2x408xf32>
    %c0_28 = arith.constant 0 : index
    %c0_29 = arith.constant 0 : index
    %c0_30 = arith.constant 0 : index
    %69 = vector.load %arg7[%c0_28, %c0_29, %c0_30] : memref<1x6x408xf32, #tpu.memory_space<vmem>>, vector<1x2x408xf32>
    %70 = vector.shape_cast %69 : vector<1x2x408xf32> to vector<2x408xf32>
    %71 = vector.shape_cast %68 : vector<2x408xf32> to vector<1x2x408xf32>
    tpu.vector_store %arg7[%c0_28, %c0_29, %c0_30], %71 {strides = array<i32>} : memref<1x6x408xf32, #tpu.memory_space<vmem>>, vector<1x2x408xf32>,
    %72 = vector.extract_strided_slice %67 {offsets = [2, 0], sizes = [4, 408], strides = [1, 1]} : vector<6x408xf32> to vector<4x408xf32>
    %cst_31 = arith.constant 8.000000e+01 : f32
    %73 = vector.broadcast %cst_31 : f32 to vector<4x408xf32>
    %74 = arith.minimumf %72, %73 : vector<4x408xf32>
    %75 = math.exp %74 : vector<4x408xf32>
    %cst_32 = arith.constant 8.000000e+00 : f32
    %76 = vector.broadcast %cst_32 : f32 to vector<4x408xf32>
    %77 = arith.addf %75, %76 : vector<4x408xf32>
    %78 = tpu.iota {dimensions = array<i32: 0>} : vector<4x1xi32>
    %c2_i32 = arith.constant 2 : i32
    %79 = vector.broadcast %c2_i32 : i32 to vector<4x1xi32>
    %80 = arith.cmpi slt, %78, %79 : vector<4x1xi32>
    %cst_33 = arith.constant -1.000000e+00 : f32
    %cst_34 = arith.constant 1.000000e+00 : f32
    %81 = vector.broadcast %cst_33 : f32 to vector<4x1xf32>
    %82 = vector.broadcast %cst_34 : f32 to vector<4x1xf32>
    %83 = arith.select %80, %81, %82 : vector<4x1xi1>, vector<4x1xf32>
    %c0_35 = arith.constant 0 : index
    %c0_36 = arith.constant 0 : index
    %84 = vector.load %arg6[%c0_35, %c0_36] : memref<4x408xf32, #tpu.memory_space<vmem>>, vector<4x408xf32>
    %85 = vector.broadcast %83 : vector<4x1xf32> to vector<4x408xf32>
    %86 = arith.mulf %85, %77 : vector<4x408xf32>
    %87 = arith.addf %84, %86 : vector<4x408xf32>
    %c0_37 = arith.constant 0 : index
    %c2_38 = arith.constant 2 : index
    %c0_39 = arith.constant 0 : index
    %88 = vector.load %arg7[%c0_37, %c2_38, %c0_39] : memref<1x6x408xf32, #tpu.memory_space<vmem>>, vector<1x4x408xf32>
    %89 = vector.shape_cast %88 : vector<1x4x408xf32> to vector<4x408xf32>
    %90 = vector.shape_cast %87 : vector<4x408xf32> to vector<1x4x408xf32>
    tpu.vector_store %arg7[%c0_37, %c2_38, %c0_39], %90 {strides = array<i32>} : memref<1x6x408xf32, #tpu.memory_space<vmem>>, vector<1x4x408xf32>,
    return
  }
  func.func @transform_0(%arg0: i32) -> (i32, i32, i32) {
    %c0_i32 = arith.constant 0 : i32
    %c0_i32_0 = arith.constant 0 : i32
    %c0_i32_1 = arith.constant 0 : i32
    return %arg0, %c0_i32, %c0_i32_0 : i32, i32, i32
  }
  func.func @transform_1(%arg0: i32) -> (i32, i32, i32) {
    %c0_i32 = arith.constant 0 : i32
    %c0_i32_0 = arith.constant 0 : i32
    %c0_i32_1 = arith.constant 0 : i32
    %c0_i32_2 = arith.constant 0 : i32
    return %c0_i32, %c0_i32_0, %c0_i32_1 : i32, i32, i32
  }
  func.func @transform_2(%arg0: i32) -> (i32, i32, i32) {
    %c0_i32 = arith.constant 0 : i32
    %c0_i32_0 = arith.constant 0 : i32
    %c0_i32_1 = arith.constant 0 : i32
    %c0_i32_2 = arith.constant 0 : i32
    return %c0_i32, %c0_i32_0, %c0_i32_1 : i32, i32, i32
  }
  func.func @transform_3(%arg0: i32) -> (i32, i32) {
    %c0_i32 = arith.constant 0 : i32
    %c0_i32_0 = arith.constant 0 : i32
    %c0_i32_1 = arith.constant 0 : i32
    return %c0_i32, %c0_i32_0 : i32, i32
  }
  func.func @transform_4(%arg0: i32) -> (i32, i32) {
    %c0_i32 = arith.constant 0 : i32
    %c0_i32_0 = arith.constant 0 : i32
    %c0_i32_1 = arith.constant 0 : i32
    return %c0_i32, %c0_i32_0 : i32, i32
  }
  func.func @transform_5(%arg0: i32) -> (i32, i32) {
    %c0_i32 = arith.constant 0 : i32
    %c0_i32_0 = arith.constant 0 : i32
    %c0_i32_1 = arith.constant 0 : i32
    return %c0_i32, %c0_i32_0 : i32, i32
  }
  func.func @transform_6(%arg0: i32) -> (i32, i32, i32) {
    %c0_i32 = arith.constant 0 : i32
    %c0_i32_0 = arith.constant 0 : i32
    %c0_i32_1 = arith.constant 0 : i32
    return %arg0, %c0_i32, %c0_i32_0 : i32, i32, i32
  }
}

</mosaic_0001>

<llo_original>
// kernel: tpu_custom_call.1
$region0: #{tpu_custom_call.1}
  #allocation0 [shape = 'u32[]', space=smem, size = 0x4, offset = 0x4, fixed_abs, tag = 'smem constant byte address 0x4 - core index']
  #allocation1 [shape = 'u32[144,128]{1,0:T(1,128)}', space=vmem, size = 0x12000, scoped, tag = 'internal scratch']
  %s0 = inlined_call_operand.hbm [shape: f32[2,32,576], index: 0, kind: input, shape index: {}]
  %s1 = inlined_call_operand.hbm [shape: bf16[3,32,288], index: 1, kind: input, shape index: {}]
  %s2 = inlined_call_operand.vmem [shape: f32[3,32,1], index: 2, kind: input, shape index: {}]
  %s3 = inlined_call_operand.vmem [shape: bf16[6,32], index: 3, kind: input, shape index: {}]
  %s4 = inlined_call_operand.vmem [shape: f32[6,1], index: 4, kind: input, shape index: {}]
  %s5 = inlined_call_operand.vmem [shape: f32[4,408], index: 5, kind: input, shape index: {}]
  %s6 = inlined_call_operand.vmem [shape: f32[2,6,408], index: 6, kind: output, shape index: {}]
  %s7 = sld [smem:[#allocation0]]
  $region65: #{tpu_custom_call.1} parent=0
    _
  %s9 = ssub.s32 1, %s7
  %s10 = scalar_select 0, %s9, %s7
  $region1: #{tpu_custom_call.1} parent=0
    #allocation2 [shape = 'u8[163840]{0}', space=vmem, size = 0x28000, scoped, tag = 'input window, operand 0']
    #allocation3 [shape = 's32[2]{0}', space=sflag, size = 0x8, scoped, tag = 'scoped memory for tpu_custom_call.1']
    #allocation4 [shape = 'u8[73728]{0}', space=vmem, size = 0x12000, scoped, tag = 'input window, operand 1, single buffered']
    #allocation5 [shape = 's32[1]{0}', space=sflag, size = 0x4, scoped, tag = 'scoped memory for tpu_custom_call.1']
    %11 = vsyncpa [#allocation3], 0
    %s12 = scalar_lea.sflag [#allocation3], 1
    %13 = vsyncpa %s12, 0
    %14 = vsyncpa [#allocation5], 0
    loop: start=0, step=1, limit=4
    $region2: #{tpu_custom_call.1} parent=1 // loop_pre_header
      _
    $region3: #{tpu_custom_call.1} parent=1 // loop_header
      %s16 = sphi 0, %s20
      %p17 = scmp.ge.s32.totalorder %s16, 4
      %s26 = sphi 0, %s28
      %s29 = sphi 0, %s26
      %s30 = sphi 0, %s29
      %s46 = sphi 0, %s30
      %s50 = sphi 0, %s50
      %s52 = sphi 0, %s50
      %s53 = sphi 0, %s52
      %s67 = sphi 0, %s53
      %s71 = sphi 0, %s71
      %s73 = sphi 0, %s71
      %s74 = sphi 0, %s73
      %s88 = sphi 0, %s74
      %s92 = sphi 0, %s92
      %s94 = sphi 0, %s92
      %s95 = sphi 0, %s94
      %s109 = sphi 0, %s95
      %s113 = sphi 0, %s113
      %s115 = sphi 0, %s113
      %s116 = sphi 0, %s115
      %s130 = sphi 0, %s116
      %s134 = sphi 0, %s134
      %s136 = sphi 0, %s134
      %s137 = sphi 0, %s136
      %s151 = sphi 0, %s137
      %s157 = sphi 0, %s159
      %s160 = sphi 0, %s157
      %s161 = sphi 0, %s160
      %s177 = sphi 0, %s161
    $region4: #{tpu_custom_call.1} parent=1 // loop_header_branch
      %19 = sbr.rel (%p17) target = $region8
    $region5: #{tpu_custom_call.1} parent=1 // loop_body
      %s21 = ssub.s32 %s16, 1
      %s22 = ssub.s32 %s16, 2
      %s23 = sadd.s32 %s16, 1
      %s24 = ssub.s32 %s16, %s23
      %p25 = scmp.eq.s32.totalorder %s24, 0
      %s27 = sadd.s32 %s26, 1
      %s28 = scalar_select %p25, %s26, %s27
      %p31 = pneg %p25
      %p32 = scmp.eq.s32.totalorder %s16, 1
      %p33 = por %p31, %p32
      %p34 = scmp.ne.s32.totalorder %s26, %s29
      %p35 = scmp.eq.s32.totalorder %s16, 0
      %p36 = por %p34, %p35
      %p37 = scmp.ne.s32.totalorder %s26, %s29
      %p38 = scmp.eq.s32.totalorder %s21, 1
      %p39 = por %p37, %p38
      %p40 = scmp.ne.s32.totalorder %s29, %s30
      %p41 = scmp.eq.s32.totalorder %s21, 0
      %p42 = por %p40, %p41
      %p43 = scmp.ne.s32.totalorder %s29, %s30
      %p44 = scmp.eq.s32.totalorder %s22, 1
      %p45 = por %p43, %p44
      %p47 = scmp.ne.s32.totalorder %s30, %s46
      %p48 = scmp.eq.s32.totalorder %s22, 0
      %p49 = por %p47, %p48
      %s51 = sadd.s32 %s50, 1
      %p54 = scmp.eq.s32.totalorder %s16, 1
      %p55 = scmp.ne.s32.totalorder %s50, %s52
      %p56 = scmp.eq.s32.totalorder %s16, 0
      %p57 = por %p55, %p56
      %p58 = scmp.ne.s32.totalorder %s50, %s52
      %p59 = scmp.eq.s32.totalorder %s21, 1
      %p60 = por %p58, %p59
      %p61 = scmp.ne.s32.totalorder %s52, %s53
      %p62 = scmp.eq.s32.totalorder %s21, 0
      %p63 = por %p61, %p62
      %p64 = scmp.ne.s32.totalorder %s52, %s53
      %p65 = scmp.eq.s32.totalorder %s22, 1
      %p66 = por %p64, %p65
      %p68 = scmp.ne.s32.totalorder %s53, %s67
      %p69 = scmp.eq.s32.totalorder %s22, 0
      %p70 = por %p68, %p69
      %s72 = sadd.s32 %s71, 1
      %p75 = scmp.eq.s32.totalorder %s16, 1
      %p76 = scmp.ne.s32.totalorder %s71, %s73
      %p77 = scmp.eq.s32.totalorder %s16, 0
      %p78 = por %p76, %p77
      %p79 = scmp.ne.s32.totalorder %s71, %s73
      %p80 = scmp.eq.s32.totalorder %s21, 1
      %p81 = por %p79, %p80
      %p82 = scmp.ne.s32.totalorder %s73, %s74
      %p83 = scmp.eq.s32.totalorder %s21, 0
      %p84 = por %p82, %p83
      %p85 = scmp.ne.s32.totalorder %s73, %s74
      %p86 = scmp.eq.s32.totalorder %s22, 1
      %p87 = por %p85, %p86
      %p89 = scmp.ne.s32.totalorder %s74, %s88
      %p90 = scmp.eq.s32.totalorder %s22, 0
      %p91 = por %p89, %p90
      %s93 = sadd.s32 %s92, 1
      %p96 = scmp.eq.s32.totalorder %s16, 1
      %p97 = scmp.ne.s32.totalorder %s92, %s94
      %p98 = scmp.eq.s32.totalorder %s16, 0
      %p99 = por %p97, %p98
      %p100 = scmp.ne.s32.totalorder %s92, %s94
      %p101 = scmp.eq.s32.totalorder %s21, 1
      %p102 = por %p100, %p101
      %p103 = scmp.ne.s32.totalorder %s94, %s95
      %p104 = scmp.eq.s32.totalorder %s21, 0
      %p105 = por %p103, %p104
      %p106 = scmp.ne.s32.totalorder %s94, %s95
      %p107 = scmp.eq.s32.totalorder %s22, 1
      %p108 = por %p106, %p107
      %p110 = scmp.ne.s32.totalorder %s95, %s109
      %p111 = scmp.eq.s32.totalorder %s22, 0
      %p112 = por %p110, %p111
      %s114 = sadd.s32 %s113, 1
      %p117 = scmp.eq.s32.totalorder %s16, 1
      %p118 = scmp.ne.s32.totalorder %s113, %s115
      %p119 = scmp.eq.s32.totalorder %s16, 0
      %p120 = por %p118, %p119
      %p121 = scmp.ne.s32.totalorder %s113, %s115
      %p122 = scmp.eq.s32.totalorder %s21, 1
      %p123 = por %p121, %p122
      %p124 = scmp.ne.s32.totalorder %s115, %s116
      %p125 = scmp.eq.s32.totalorder %s21, 0
      %p126 = por %p124, %p125
      %p127 = scmp.ne.s32.totalorder %s115, %s116
      %p128 = scmp.eq.s32.totalorder %s22, 1
      %p129 = por %p127, %p128
      %p131 = scmp.ne.s32.totalorder %s116, %s130
      %p132 = scmp.eq.s32.totalorder %s22, 0
      %p133 = por %p131, %p132
      %s135 = sadd.s32 %s134, 1
      %p138 = scmp.eq.s32.totalorder %s16, 1
      %p139 = scmp.ne.s32.totalorder %s134, %s136
      %p140 = scmp.eq.s32.totalorder %s16, 0
      %p141 = por %p139, %p140
      %p142 = scmp.ne.s32.totalorder %s134, %s136
      %p143 = scmp.eq.s32.totalorder %s21, 1
      %p144 = por %p142, %p143
      %p145 = scmp.ne.s32.totalorder %s136, %s137
      %p146 = scmp.eq.s32.totalorder %s21, 0
      %p147 = por %p145, %p146
      %p148 = scmp.ne.s32.totalorder %s136, %s137
      %p149 = scmp.eq.s32.totalorder %s22, 1
      %p150 = por %p148, %p149
      %p152 = scmp.ne.s32.totalorder %s137, %s151
      %p153 = scmp.eq.s32.totalorder %s22, 0
      %p154 = por %p152, %p153
      %s155 = ssub.s32 %s16, %s23
      %p156 = scmp.eq.s32.totalorder %s155, 0
      %s158 = sadd.s32 %s157, 1
      %s159 = scalar_select %p156, %s157, %s158
      %p162 = pneg %p156
      %p163 = scmp.eq.s32.totalorder %s16, 1
      %p164 = por %p162, %p163
      %p165 = scmp.ne.s32.totalorder %s157, %s160
      %p166 = scmp.eq.s32.totalorder %s16, 0
      %p167 = por %p165, %p166
      %p168 = scmp.ne.s32.totalorder %s157, %s160
      %p169 = scmp.eq.s32.totalorder %s21, 1
      %p170 = por %p168, %p169
      %p171 = scmp.ne.s32.totalorder %s160, %s161
      %p172 = scmp.eq.s32.totalorder %s21, 0
      %p173 = por %p171, %p172
      %p174 = scmp.ne.s32.totalorder %s160, %s161
      %p175 = scmp.eq.s32.totalorder %s22, 1
      %p176 = por %p174, %p175
      %p178 = scmp.ne.s32.totalorder %s161, %s177
      %p179 = scmp.eq.s32.totalorder %s22, 0
      %p180 = por %p178, %p179
      %p181 = scmp.le.s32.totalorder 1, %s16
      %p182 = scmp.lt.s32.totalorder %s16, 3
      %p183 = pnand %p181, %p182
      %p184 = pneg %p183
      // Predicated region
      $region9: #{tpu_custom_call.1} parent=5 // pred_check
        _
      $region10: #{tpu_custom_call.1} parent=5 // pred_check_branch
        %186 = sbr.rel (%p183) target = $region12
      $region11: #{tpu_custom_call.1} parent=5 // pred_region
        %s187 = ssub.s32 %s16, 1
        // Predicated region
        $region13: #{tpu_custom_call.1} parent=11 // pred_check
          %p188 = pneg %p63
        $region14: #{tpu_custom_call.1} parent=11 // pred_check_branch
          %190 = sbr.rel (%p188) target = $region16
        $region15: #{tpu_custom_call.1} parent=11 // pred_region
          %s192 = ssub.s32 2304, 2304
          %193 = vsyncadd [#allocation5], %s192
          %s194 = sshll.u32 [#allocation4], 4
          %s195 = int_to_ptr.vmem [resolvable:$true] %s194
          %200 = dma.hbm_to_vmem [thread:$0]  %s1, 2304, %s195, [#allocation5], 192, 192, 12
        $region16: #{tpu_custom_call.1} parent=11 // pred_fallthru
          _
        // Predicated region
        $region17: #{tpu_custom_call.1} parent=11 // pred_check
          %p201 = pneg %p84
        $region18: #{tpu_custom_call.1} parent=11 // pred_check_branch
          %203 = sbr.rel (%p201) target = $region20
        $region19: #{tpu_custom_call.1} parent=11 // pred_region
          _
        $region20: #{tpu_custom_call.1} parent=11 // pred_fallthru
          _
        // Predicated region
        $region21: #{tpu_custom_call.1} parent=11 // pred_check
          %p204 = pneg %p105
        $region22: #{tpu_custom_call.1} parent=11 // pred_check_branch
          %206 = sbr.rel (%p204) target = $region24
        $region23: #{tpu_custom_call.1} parent=11 // pred_region
          _
        $region24: #{tpu_custom_call.1} parent=11 // pred_fallthru
          _
        // Predicated region
        $region25: #{tpu_custom_call.1} parent=11 // pred_check
          %p207 = pneg %p126
        $region26: #{tpu_custom_call.1} parent=11 // pred_check_branch
          %209 = sbr.rel (%p207) target = $region28
        $region27: #{tpu_custom_call.1} parent=11 // pred_region
          _
        $region28: #{tpu_custom_call.1} parent=11 // pred_fallthru
          _
        // Predicated region
        $region29: #{tpu_custom_call.1} parent=11 // pred_check
          %p210 = pneg %p147
        $region30: #{tpu_custom_call.1} parent=11 // pred_check_branch
          %212 = sbr.rel (%p210) target = $region32
        $region31: #{tpu_custom_call.1} parent=11 // pred_region
          _
        $region32: #{tpu_custom_call.1} parent=11 // pred_fallthru
          _
      $region12: #{tpu_custom_call.1} parent=5 // pred_fallthru
        _
      %p213 = scmp.lt.s32.totalorder %s16, 2
      // Predicated region
      $region33: #{tpu_custom_call.1} parent=5 // pred_check
        %p214 = pneg %p213
      $region34: #{tpu_custom_call.1} parent=5 // pred_check_branch
        %216 = sbr.rel (%p214) target = $region36
      $region35: #{tpu_custom_call.1} parent=5 // pred_region
        // Predicated region
        $region37: #{tpu_custom_call.1} parent=35 // pred_check
          %p217 = pneg %p36
        $region38: #{tpu_custom_call.1} parent=35 // pred_check_branch
          %219 = sbr.rel (%p217) target = $region40
        $region39: #{tpu_custom_call.1} parent=35 // pred_region
          %s220 = sand.u32 %s26, 1
          %s221 = scalar_lea.sflag [#allocation3], %s220
          %s222 = sand.u32 %s26, 1
          %s223 = smul.addr %s222, 160
          %s224 = scalar_lea.vmem [#allocation2], %s223
          %s226 = ssub.s32 2560, 2560
          %227 = vsyncadd %s221, %s226
          %s228 = smul.addr %s16, 20
          %s229 = smul.addr %s228, 128
          %s230 = scalar_lea.hbm %s0, %s229
          %s231 = sshll.u32 %s224, 4
          %s232 = int_to_ptr.vmem [resolvable:$true] %s231
          %237 = dma.hbm_to_vmem [thread:$0]  %s230, 2560, %s232, %s221, 640, 640, 40
        $region40: #{tpu_custom_call.1} parent=35 // pred_fallthru
          _
      $region36: #{tpu_custom_call.1} parent=5 // pred_fallthru
        _
      %p238 = scmp.le.s32.totalorder 1, %s16
      %p239 = scmp.lt.s32.totalorder %s16, 3
      %p240 = pnand %p238, %p239
      %p241 = pneg %p240
      // Predicated region
      $region41: #{tpu_custom_call.1} parent=5 // pred_check
        _
      $region42: #{tpu_custom_call.1} parent=5 // pred_check_branch
        %243 = sbr.rel (%p240) target = $region44
      $region43: #{tpu_custom_call.1} parent=5 // pred_region
        %s244 = ssub.s32 %s16, 1
        %s245 = sand.u32 %s29, 1
        %s246 = scalar_lea.sflag [#allocation3], %s245
        %s247 = sand.u32 %s29, 1
        %s248 = smul.addr %s247, 160
        %s249 = scalar_lea.vmem [#allocation2], %s248
        // Predicated region
        $region45: #{tpu_custom_call.1} parent=43 // pred_check
          %p250 = pneg %p42
        $region46: #{tpu_custom_call.1} parent=43 // pred_check_branch
          %252 = sbr.rel (%p250) target = $region48
        $region47: #{tpu_custom_call.1} parent=43 // pred_region
          %253 = dma.done %s246, 2560
        $region48: #{tpu_custom_call.1} parent=43 // pred_fallthru
          _
        // Predicated region
        $region49: #{tpu_custom_call.1} parent=43 // pred_check
          %p254 = pneg %p63
        $region50: #{tpu_custom_call.1} parent=43 // pred_check_branch
          %256 = sbr.rel (%p254) target = $region52
        $region51: #{tpu_custom_call.1} parent=43 // pred_region
          %257 = dma.done [#allocation5], 2304
        $region52: #{tpu_custom_call.1} parent=43 // pred_fallthru
          _
        %s258 = sand.u32 %s29, 1
        %s259 = scalar_lea.sflag [#allocation3], %s258
        %s260 = sand.u32 %s29, 1
        %s261 = smul.addr %s260, 160
        %s262 = scalar_lea.vmem [#allocation2], %s261
        %p263 = pneg %p42
        %p264 = pneg %p39
        %p265 = pneg %p63
        %p266 = pneg %p60
        %p267 = pneg %p84
        %p268 = pneg %p81
        %p269 = pneg %p105
        %p270 = pneg %p102
        %p271 = pneg %p126
        %p272 = pneg %p123
        %p273 = pneg %p147
        %p274 = pneg %p144
        %p275 = pneg %p173
        %p276 = pneg %p170
        %p277 = scmp.lt.s32.totalorder %s21, 1
        %s278 = scalar_select %p277, %s21, 1
        %s279 = smul.addr %s278, 4
        %s280 = smul.addr %s279, 8
        %s281 = scalar_lea.vmem %s6, %s280
        %p282 = scmp.lt.s32.totalorder %s21, 1
        %s283 = scalar_select %p282, %s21, 1
        %s284 = smul.addr %s283, 4
        %s285 = smul.addr %s284, 8
        %s286 = scalar_lea.vmem %s6, %s285
        %v288 = vld [vmem:[%s249] sm:$0xff]
        %v289 = vld [vmem:[%s249 + $0x8] sm:$0xff]
        %v290 = vld [vmem:[%s249 + $0x10] sm:$0xff]
        %v291 = vld [vmem:[%s249 + $0x18] sm:$0xff]
        %v292 = vld [vmem:[%s249 + $0x20] sm:$0xff]
        %v293 = vld [vmem:[%s249 + $0x28] sm:$0xff]
        %v294 = vld [vmem:[%s249 + $0x30] sm:$0xff]
        %v295 = vld [vmem:[%s249 + $0x38] sm:$0xff]
        %v296 = vld [vmem:[%s249 + $0x40] sm:$0xff]
        %v297 = vld [vmem:[%s249 + $0x48] sm:$0xff]
        %v298 = vld [vmem:[%s249 + $0x50] sm:$0xff]
        %v299 = vld [vmem:[%s249 + $0x58] sm:$0xff]
        %v300 = vld [vmem:[%s249 + $0x60] sm:$0xff]
        %v301 = vld [vmem:[%s249 + $0x68] sm:$0xff]
        %v302 = vld [vmem:[%s249 + $0x70] sm:$0xff]
        %v303 = vld [vmem:[%s249 + $0x78] sm:$0xff]
        %v304 = vld [vmem:[%s249 + $0x80] sm:$0xff]
        %v305 = vld [vmem:[%s249 + $0x88] sm:$0xff]
        %v306 = vld [vmem:[%s249 + $0x90] sm:$0xff]
        %v307 = vld [vmem:[%s249 + $0x98] sm:$0xff]
        %v308 = vpack.c.bf16 %v293, %v288
        %v309 = vpack.c.bf16 %v294, %v289
        %v310 = vpack.c.bf16 %v295, %v290
        %v311 = vpack.c.bf16 %v296, %v291
        %v312 = vpack.c.bf16 %v297, %v292
        %v313 = vpack.c.bf16 %v303, %v298
        %v314 = vpack.c.bf16 %v304, %v299
        %v315 = vpack.c.bf16 %v305, %v300
        %v316 = vpack.c.bf16 %v306, %v301
        %v317 = vpack.c.bf16 %v307, %v302
        %328 = vrot.lane.b32.xlu0 %v308, 127
        %v329 = vpop.permute.xlu0 %328
        %330 = vrot.lane.b32.xlu0 %v309, 127
        %v331 = vpop.permute.xlu0 %330
        %332 = vrot.lane.b32.xlu0 %v310, 127
        %v333 = vpop.permute.xlu0 %332
        %334 = vrot.lane.b32.xlu0 %v311, 127
        %v335 = vpop.permute.xlu0 %334
        %336 = vrot.lane.b32.xlu0 %v312, 127
        %v337 = vpop.permute.xlu0 %336
        %338 = vrot.lane.b32.xlu0 %v313, 127
        %v339 = vpop.permute.xlu0 %338
        %340 = vrot.lane.b32.xlu0 %v314, 127
        %v341 = vpop.permute.xlu0 %340
        %342 = vrot.lane.b32.xlu0 %v315, 127
        %v343 = vpop.permute.xlu0 %342
        %344 = vrot.lane.b32.xlu0 %v316, 127
        %v345 = vpop.permute.xlu0 %344
        %346 = vrot.lane.b32.xlu0 %v317, 127
        %v347 = vpop.permute.xlu0 %346
        %vm348 = vcmask 1039360
        %v349 = vsel %vm348, %v329, %v331
        %v350 = vsel %vm348, %v331, %v333
        %v351 = vsel %vm348, %v333, %v335
        %v352 = vsel %vm348, %v335, %v337
        %v353 = vsel %vm348, %v339, %v341
        %v354 = vsel %vm348, %v341, %v343
        %v355 = vsel %vm348, %v343, %v345
        %v356 = vsel %vm348, %v345, %v347
        %367 = vrot.lane.b32.xlu0 %v308, 126
        %v368 = vpop.permute.xlu0 %367
        %369 = vrot.lane.b32.xlu0 %v309, 126
        %v370 = vpop.permute.xlu0 %369
        %371 = vrot.lane.b32.xlu0 %v310, 126
        %v372 = vpop.permute.xlu0 %371
        %373 = vrot.lane.b32.xlu0 %v311, 126
        %v374 = vpop.permute.xlu0 %373
        %375 = vrot.lane.b32.xlu0 %v312, 126
        %v376 = vpop.permute.xlu0 %375
        %377 = vrot.lane.b32.xlu0 %v313, 126
        %v378 = vpop.permute.xlu0 %377
        %379 = vrot.lane.b32.xlu0 %v314, 126
        %v380 = vpop.permute.xlu0 %379
        %381 = vrot.lane.b32.xlu0 %v315, 126
        %v382 = vpop.permute.xlu0 %381
        %383 = vrot.lane.b32.xlu0 %v316, 126
        %v384 = vpop.permute.xlu0 %383
        %385 = vrot.lane.b32.xlu0 %v317, 126
        %v386 = vpop.permute.xlu0 %385
        %vm387 = vcmask 1031168
        %v388 = vsel %vm387, %v368, %v370
        %v389 = vsel %vm387, %v370, %v372
        %v390 = vsel %vm387, %v372, %v374
        %v391 = vsel %vm387, %v374, %v376
        %v392 = vsel %vm387, %v378, %v380
        %v393 = vsel %vm387, %v380, %v382
        %v394 = vsel %vm387, %v382, %v384
        %v395 = vsel %vm387, %v384, %v386
        %406 = vrot.lane.b32.xlu0 %v308, 104
        %v407 = vpop.permute.xlu0 %406
        %408 = vrot.lane.b32.xlu0 %v309, 104
        %v409 = vpop.permute.xlu0 %408
        %410 = vrot.lane.b32.xlu0 %v310, 104
        %v411 = vpop.permute.xlu0 %410
        %412 = vrot.lane.b32.xlu0 %v311, 104
        %v413 = vpop.permute.xlu0 %412
        %414 = vrot.lane.b32.xlu0 %v312, 104
        %v415 = vpop.permute.xlu0 %414
        %416 = vrot.lane.b32.xlu0 %v313, 104
        %v417 = vpop.permute.xlu0 %416
        %418 = vrot.lane.b32.xlu0 %v314, 104
        %v419 = vpop.permute.xlu0 %418
        %420 = vrot.lane.b32.xlu0 %v315, 104
        %v421 = vpop.permute.xlu0 %420
        %422 = vrot.lane.b32.xlu0 %v316, 104
        %v423 = vpop.permute.xlu0 %422
        %424 = vrot.lane.b32.xlu0 %v317, 104
        %v425 = vpop.permute.xlu0 %424
        %vm426 = vcmask 850944
        %v427 = vsel %vm426, %v407, %v409
        %v428 = vsel %vm426, %v409, %v411
        %v429 = vsel %vm426, %v411, %v413
        %v430 = vsel %vm426, %v413, %v415
        %v431 = vsel %vm426, %v417, %v419
        %v432 = vsel %vm426, %v419, %v421
        %v433 = vsel %vm426, %v421, %v423
        %v434 = vsel %vm426, %v423, %v425
        %445 = vrot.lane.b32.xlu0 %v308, 103
        %v446 = vpop.permute.xlu0 %445
        %447 = vrot.lane.b32.xlu0 %v309, 103
        %v448 = vpop.permute.xlu0 %447
        %449 = vrot.lane.b32.xlu0 %v310, 103
        %v450 = vpop.permute.xlu0 %449
        %451 = vrot.lane.b32.xlu0 %v311, 103
        %v452 = vpop.permute.xlu0 %451
        %453 = vrot.lane.b32.xlu0 %v312, 103
        %v454 = vpop.permute.xlu0 %453
        %455 = vrot.lane.b32.xlu0 %v313, 103
        %v456 = vpop.permute.xlu0 %455
        %457 = vrot.lane.b32.xlu0 %v314, 103
        %v458 = vpop.permute.xlu0 %457
        %459 = vrot.lane.b32.xlu0 %v315, 103
        %v460 = vpop.permute.xlu0 %459
        %461 = vrot.lane.b32.xlu0 %v316, 103
        %v462 = vpop.permute.xlu0 %461
        %463 = vrot.lane.b32.xlu0 %v317, 103
        %v464 = vpop.permute.xlu0 %463
        %vm465 = vcmask 842752
        %v466 = vsel %vm465, %v446, %v448
        %v467 = vsel %vm465, %v448, %v450
        %v468 = vsel %vm465, %v450, %v452
        %v469 = vsel %vm465, %v452, %v454
        %v470 = vsel %vm465, %v456, %v458
        %v471 = vsel %vm465, %v458, %v460
        %v472 = vsel %vm465, %v460, %v462
        %v473 = vsel %vm465, %v462, %v464
        %484 = vrot.lane.b32.xlu0 %v308, 102
        %v485 = vpop.permute.xlu0 %484
        %486 = vrot.lane.b32.xlu0 %v309, 102
        %v487 = vpop.permute.xlu0 %486
        %488 = vrot.lane.b32.xlu0 %v310, 102
        %v489 = vpop.permute.xlu0 %488
        %490 = vrot.lane.b32.xlu0 %v311, 102
        %v491 = vpop.permute.xlu0 %490
        %492 = vrot.lane.b32.xlu0 %v312, 102
        %v493 = vpop.permute.xlu0 %492
        %494 = vrot.lane.b32.xlu0 %v313, 102
        %v495 = vpop.permute.xlu0 %494
        %496 = vrot.lane.b32.xlu0 %v314, 102
        %v497 = vpop.permute.xlu0 %496
        %498 = vrot.lane.b32.xlu0 %v315, 102
        %v499 = vpop.permute.xlu0 %498
        %500 = vrot.lane.b32.xlu0 %v316, 102
        %v501 = vpop.permute.xlu0 %500
        %502 = vrot.lane.b32.xlu0 %v317, 102
        %v503 = vpop.permute.xlu0 %502
        %vm504 = vcmask 834560
        %v505 = vsel %vm504, %v485, %v487
        %v506 = vsel %vm504, %v487, %v489
        %v507 = vsel %vm504, %v489, %v491
        %v508 = vsel %vm504, %v491, %v493
        %v509 = vsel %vm504, %v495, %v497
        %v510 = vsel %vm504, %v497, %v499
        %v511 = vsel %vm504, %v499, %v501
        %v512 = vsel %vm504, %v501, %v503
        %523 = vrot.lane.b32.xlu0 %v308, 80
        %v524 = vpop.permute.xlu0 %523
        %525 = vrot.lane.b32.xlu0 %v309, 80
        %v526 = vpop.permute.xlu0 %525
        %527 = vrot.lane.b32.xlu0 %v310, 80
        %v528 = vpop.permute.xlu0 %527
        %529 = vrot.lane.b32.xlu0 %v311, 80
        %v530 = vpop.permute.xlu0 %529
        %531 = vrot.lane.b32.xlu0 %v312, 80
        %v532 = vpop.permute.xlu0 %531
        %533 = vrot.lane.b32.xlu0 %v313, 80
        %v534 = vpop.permute.xlu0 %533
        %535 = vrot.lane.b32.xlu0 %v314, 80
        %v536 = vpop.permute.xlu0 %535
        %537 = vrot.lane.b32.xlu0 %v315, 80
        %v538 = vpop.permute.xlu0 %537
        %539 = vrot.lane.b32.xlu0 %v316, 80
        %v540 = vpop.permute.xlu0 %539
        %541 = vrot.lane.b32.xlu0 %v317, 80
        %v542 = vpop.permute.xlu0 %541
        %vm543 = vcmask 654336
        %v544 = vsel %vm543, %v524, %v526
        %v545 = vsel %vm543, %v526, %v528
        %v546 = vsel %vm543, %v528, %v530
        %v547 = vsel %vm543, %v530, %v532
        %v548 = vsel %vm543, %v534, %v536
        %v549 = vsel %vm543, %v536, %v538
        %v550 = vsel %vm543, %v538, %v540
        %v551 = vsel %vm543, %v540, %v542
        %562 = vrot.lane.b32.xlu0 %v308, 79
        %v563 = vpop.permute.xlu0 %562
        %564 = vrot.lane.b32.xlu0 %v309, 79
        %v565 = vpop.permute.xlu0 %564
        %566 = vrot.lane.b32.xlu0 %v310, 79
        %v567 = vpop.permute.xlu0 %566
        %568 = vrot.lane.b32.xlu0 %v311, 79
        %v569 = vpop.permute.xlu0 %568
        %570 = vrot.lane.b32.xlu0 %v312, 79
        %v571 = vpop.permute.xlu0 %570
        %572 = vrot.lane.b32.xlu0 %v313, 79
        %v573 = vpop.permute.xlu0 %572
        %574 = vrot.lane.b32.xlu0 %v314, 79
        %v575 = vpop.permute.xlu0 %574
        %576 = vrot.lane.b32.xlu0 %v315, 79
        %v577 = vpop.permute.xlu0 %576
        %578 = vrot.lane.b32.xlu0 %v316, 79
        %v579 = vpop.permute.xlu0 %578
        %580 = vrot.lane.b32.xlu0 %v317, 79
        %v581 = vpop.permute.xlu0 %580
        %vm582 = vcmask 646144
        %v583 = vsel %vm582, %v563, %v565
        %v584 = vsel %vm582, %v565, %v567
        %v585 = vsel %vm582, %v567, %v569
        %v586 = vsel %vm582, %v569, %v571
        %v587 = vsel %vm582, %v573, %v575
        %v588 = vsel %vm582, %v575, %v577
        %v589 = vsel %vm582, %v577, %v579
        %v590 = vsel %vm582, %v579, %v581
        %601 = vrot.lane.b32.xlu0 %v308, 78
        %v602 = vpop.permute.xlu0 %601
        %603 = vrot.lane.b32.xlu0 %v309, 78
        %v604 = vpop.permute.xlu0 %603
        %605 = vrot.lane.b32.xlu0 %v310, 78
        %v606 = vpop.permute.xlu0 %605
        %607 = vrot.lane.b32.xlu0 %v311, 78
        %v608 = vpop.permute.xlu0 %607
        %609 = vrot.lane.b32.xlu0 %v312, 78
        %v610 = vpop.permute.xlu0 %609
        %611 = vrot.lane.b32.xlu0 %v313, 78
        %v612 = vpop.permute.xlu0 %611
        %613 = vrot.lane.b32.xlu0 %v314, 78
        %v614 = vpop.permute.xlu0 %613
        %615 = vrot.lane.b32.xlu0 %v315, 78
        %v616 = vpop.permute.xlu0 %615
        %617 = vrot.lane.b32.xlu0 %v316, 78
        %v618 = vpop.permute.xlu0 %617
        %619 = vrot.lane.b32.xlu0 %v317, 78
        %v620 = vpop.permute.xlu0 %619
        %vm621 = vcmask 637952
        %v622 = vsel %vm621, %v602, %v604
        %v623 = vsel %vm621, %v604, %v606
        %v624 = vsel %vm621, %v606, %v608
        %v625 = vsel %vm621, %v608, %v610
        %v626 = vsel %vm621, %v612, %v614
        %v627 = vsel %vm621, %v614, %v616
        %v628 = vsel %vm621, %v616, %v618
        %v629 = vsel %vm621, %v618, %v620
        %v640 = vld [vmem:[#allocation4] sm:$0xff]
        %v641 = vld [vmem:[#allocation4 + $0x8] sm:$0xf]
        %v642 = vld [vmem:[#allocation4 + $0xc] sm:$0xff]
        %v643 = vld [vmem:[#allocation4 + $0x14] sm:$0xf]
        %v644 = vld [vmem:[#allocation4 + $0x18] sm:$0xff]
        %v645 = vld [vmem:[#allocation4 + $0x20] sm:$0xf]
        %v646 = vld [vmem:[#allocation4 + $0x24] sm:$0xff]
        %v647 = vld [vmem:[#allocation4 + $0x2c] sm:$0xf]
        %v648 = vld [vmem:[%s2] sm:$0xff]
        %v649 = vld [vmem:[%s2 + $0x8] sm:$0xff]
        %v650 = vld [vmem:[%s2 + $0x10] sm:$0xff]
        %v651 = vld [vmem:[%s2 + $0x18] sm:$0xff]
        %653 = vset.pattern.permute.xlu0 0
        %654 = vperm.xlu0 %653, %v648
        %v655 = vpop.permute.xlu0 %654
        %658 = vset.pattern.permute.xlu0 0
        %659 = vperm.xlu0 %658, %v649
        %v660 = vpop.permute.xlu0 %659
        %663 = vset.pattern.permute.xlu0 0
        %664 = vperm.xlu0 %663, %v650
        %v665 = vpop.permute.xlu0 %664
        %668 = vset.pattern.permute.xlu0 0
        %669 = vperm.xlu0 %668, %v651
        %v670 = vpop.permute.xlu0 %669
        %v680 = vunpack.c.l.b16 %v640
        %v681 = vunpack.c.h.b16 %v640
        %v682 = vunpack.c.l.b16 %v641
        %v683 = vunpack.c.l.b16 %v642
        %v684 = vunpack.c.h.b16 %v642
        %v685 = vunpack.c.l.b16 %v643
        %v686 = vunpack.c.l.b16 %v644
        %v687 = vunpack.c.h.b16 %v644
        %v688 = vunpack.c.l.b16 %v645
        %v689 = vunpack.c.l.b16 %v646
        %v690 = vunpack.c.h.b16 %v646
        %v691 = vunpack.c.l.b16 %v647
        %v692 = vpack.c.b16 %v683, %v680
        %v693 = vpack.c.b16 %v684, %v681
        %v694 = vpack.c.b16 %v685, %v682
        %v695 = vpack.c.b16 %v689, %v686
        %v696 = vpack.c.b16 %v690, %v687
        %v697 = vpack.c.b16 %v691, %v688
        %vm702 = vcmask 261120
        %v704 = vsel %vm702, %v694, 0
        %v707 = vsel %vm702, %v697, 0
        %709 = vmatprep.subr.bf16.mxu0 %v309
        %710 = vmatpush1.bf16.msra.mxu0 %v308
        %711 = vmatprep.subr.bf16.mxu0 %v314
        %712 = vmatpush1.bf16.msra.mxu0 %v313
        %713 = vmatprep.subr.bf16.mxu0 %v350
        %714 = vmatpush1.bf16.msra.mxu0 %v349
        %715 = vmatprep.subr.bf16.mxu0 %v354
        %716 = vmatpush1.bf16.msra.mxu0 %v353
        %717 = vmatprep.subr.bf16.mxu0 %v389
        %718 = vmatpush1.bf16.msra.mxu0 %v388
        %719 = vmatprep.subr.bf16.mxu0 %v393
        %720 = vmatpush1.bf16.msra.mxu0 %v392
        %721 = vmatprep.subr.bf16.mxu0 %v428
        %722 = vmatpush1.bf16.msra.mxu0 %v427
        %723 = vmatprep.subr.bf16.mxu0 %v432
        %724 = vmatpush1.bf16.msra.mxu0 %v431
        %725 = vmatprep.subr.bf16.mxu0 %v467
        %726 = vmatpush1.bf16.msra.mxu0 %v466
        %727 = vmatprep.subr.bf16.mxu0 %v471
        %728 = vmatpush1.bf16.msra.mxu0 %v470
        %729 = vmatprep.subr.bf16.mxu0 %v506
        %730 = vmatpush1.bf16.msra.mxu0 %v505
        %731 = vmatprep.subr.bf16.mxu0 %v510
        %732 = vmatpush1.bf16.msra.mxu0 %v509
        %733 = vmatprep.subr.bf16.mxu0 %v545
        %734 = vmatpush1.bf16.msra.mxu0 %v544
        %735 = vmatprep.subr.bf16.mxu0 %v549
        %736 = vmatpush1.bf16.msra.mxu0 %v548
        %737 = vmatprep.subr.bf16.mxu0 %v584
        %738 = vmatpush1.bf16.msra.mxu0 %v583
        %739 = vmatprep.subr.bf16.mxu0 %v588
        %740 = vmatpush1.bf16.msra.mxu0 %v587
        %741 = vmatprep.mubr.bf16.mxu0 %v693
        %742 = vmatmul.mubr.bf16.gmra.mrb[0].mxu0 %v692
        %v743 = vpop.f32.mrb[0].mxu0
        %v744 = vadd.f32 %v655, %v743
        %v745 = vpop.f32.mrb[0].mxu0
        %v746 = vadd.f32 %v655, %v745
        %v747 = vpop.f32.mrb[0].mxu0
        %v748 = vadd.f32 %v660, %v747
        %v749 = vpop.f32.mrb[0].mxu0
        %v750 = vadd.f32 %v660, %v749
        %751 = vmatprep.mubr.bf16.mxu0 %v696
        %752 = vmatmul.mubr.bf16.gmra.mrb[0].mxu0 %v695
        %v753 = vpop.f32.mrb[0].mxu0
        %v754 = vadd.f32 %v665, %v753
        %v755 = vpop.f32.mrb[0].mxu0
        %v756 = vadd.f32 %v665, %v755
        %v757 = vpop.f32.mrb[0].mxu0
        %v758 = vadd.f32 %v670, %v757
        %v759 = vpop.f32.mrb[0].mxu0
        %v760 = vadd.f32 %v670, %v759
        %761 = vdwg.mxu0
        %762 = vmatprep.subr.bf16.mxu0 %v623
        %763 = vmatpush1.bf16.msra.mxu0 %v622
        %764 = vmatprep.subr.bf16.mxu0 %v627
        %765 = vmatpush1.bf16.msra.mxu0 %v626
        %766 = vmatprep.subr.bf16.mxu0 0
        %767 = vmatpush1.bf16.msra.mxu0 0
        %768 = vmatprep.subr.bf16.mxu0 0
        %769 = vmatpush1.bf16.msra.mxu0 0
        %770 = vmatprep.subr.bf16.mxu0 0
        %771 = vmatpush1.bf16.msra.mxu0 0
        %772 = vmatprep.subr.bf16.mxu0 0
        %773 = vmatpush1.bf16.msra.mxu0 0
        %774 = vmatprep.subr.bf16.mxu0 0
        %775 = vmatpush1.bf16.msra.mxu0 0
        %776 = vmatprep.subr.bf16.mxu0 0
        %777 = vmatpush1.bf16.msra.mxu0 0
        %778 = vmatprep.subr.bf16.mxu0 0
        %779 = vmatpush1.bf16.msra.mxu0 0
        %780 = vmatprep.subr.bf16.mxu0 0
        %781 = vmatpush1.bf16.msra.mxu0 0
        %782 = vmatprep.subr.bf16.mxu0 0
        %783 = vmatpush1.bf16.msra.mxu0 0
        %784 = vmatprep.subr.bf16.mxu0 0
        %785 = vmatpush1.bf16.msra.mxu0 0
        %786 = vmatprep.subr.bf16.mxu0 0
        %787 = vmatpush1.bf16.msra.mxu0 0
        %788 = vmatprep.subr.bf16.mxu0 0
        %789 = vmatpush1.bf16.msra.mxu0 0
        %790 = vmatprep.subr.bf16.mxu0 0
        %791 = vmatpush1.bf16.msra.mxu0 0
        %792 = vmatprep.subr.bf16.mxu0 0
        %793 = vmatpush1.bf16.msra.mxu0 0
        %794 = vmatprep.mubr.bf16.mxu0 0
        %795 = vmatmul.mubr.bf16.gmra.mrb[0].mxu0 %v704
        %v796 = vpop.f32.mrb[0].mxu0
        %v797 = vadd.f32 %v744, %v796
        %v798 = vpop.f32.mrb[0].mxu0
        %v799 = vadd.f32 %v746, %v798
        %v800 = vpop.f32.mrb[0].mxu0
        %v801 = vadd.f32 %v748, %v800
        %v802 = vpop.f32.mrb[0].mxu0
        %v803 = vadd.f32 %v750, %v802
        %804 = vmatprep.mubr.bf16.mxu0 0
        %805 = vmatmul.mubr.bf16.gmra.mrb[0].mxu0 %v707
        %v806 = vpop.f32.mrb[0].mxu0
        %v807 = vadd.f32 %v754, %v806
        %v808 = vpop.f32.mrb[0].mxu0
        %v809 = vadd.f32 %v756, %v808
        %v810 = vpop.f32.mrb[0].mxu0
        %v811 = vadd.f32 %v758, %v810
        %v812 = vpop.f32.mrb[0].mxu0
        %v813 = vadd.f32 %v760, %v812
        %814 = vdwg.mxu0
        %815 = vmatprep.subr.bf16.mxu0 %v311
        %816 = vmatpush1.bf16.msra.mxu0 %v310
        %817 = vmatprep.subr.bf16.mxu0 %v316
        %818 = vmatpush1.bf16.msra.mxu0 %v315
        %819 = vmatprep.subr.bf16.mxu0 %v352
        %820 = vmatpush1.bf16.msra.mxu0 %v351
        %821 = vmatprep.subr.bf16.mxu0 %v356
        %822 = vmatpush1.bf16.msra.mxu0 %v355
        %823 = vmatprep.subr.bf16.mxu0 %v391
        %824 = vmatpush1.bf16.msra.mxu0 %v390
        %825 = vmatprep.subr.bf16.mxu0 %v395
        %826 = vmatpush1.bf16.msra.mxu0 %v394
        %827 = vmatprep.subr.bf16.mxu0 %v430
        %828 = vmatpush1.bf16.msra.mxu0 %v429
        %829 = vmatprep.subr.bf16.mxu0 %v434
        %830 = vmatpush1.bf16.msra.mxu0 %v433
        %831 = vmatprep.subr.bf16.mxu0 %v469
        %832 = vmatpush1.bf16.msra.mxu0 %v468
        %833 = vmatprep.subr.bf16.mxu0 %v473
        %834 = vmatpush1.bf16.msra.mxu0 %v472
        %835 = vmatprep.subr.bf16.mxu0 %v508
        %836 = vmatpush1.bf16.msra.mxu0 %v507
        %837 = vmatprep.subr.bf16.mxu0 %v512
        %838 = vmatpush1.bf16.msra.mxu0 %v511
        %839 = vmatprep.subr.bf16.mxu0 %v547
        %840 = vmatpush1.bf16.msra.mxu0 %v546
        %841 = vmatprep.subr.bf16.mxu0 %v551
        %842 = vmatpush1.bf16.msra.mxu0 %v550
        %843 = vmatprep.subr.bf16.mxu0 %v586
        %844 = vmatpush1.bf16.msra.mxu0 %v585
        %845 = vmatprep.subr.bf16.mxu0 %v590
        %846 = vmatpush1.bf16.msra.mxu0 %v589
        %847 = vmatprep.mubr.bf16.mxu0 %v693
        %848 = vmatmul.mubr.bf16.gmra.mrb[0].mxu0 %v692
        %v849 = vpop.f32.mrb[0].mxu0
        %v850 = vadd.f32 %v655, %v849
        %v851 = vpop.f32.mrb[0].mxu0
        %v852 = vadd.f32 %v655, %v851
        %v853 = vpop.f32.mrb[0].mxu0
        %v854 = vadd.f32 %v660, %v853
        %v855 = vpop.f32.mrb[0].mxu0
        %v856 = vadd.f32 %v660, %v855
        %857 = vmatprep.mubr.bf16.mxu0 %v696
        %858 = vmatmul.mubr.bf16.gmra.mrb[0].mxu0 %v695
        %v859 = vpop.f32.mrb[0].mxu0
        %v860 = vadd.f32 %v665, %v859
        %v861 = vpop.f32.mrb[0].mxu0
        %v862 = vadd.f32 %v665, %v861
        %v863 = vpop.f32.mrb[0].mxu0
        %v864 = vadd.f32 %v670, %v863
        %v865 = vpop.f32.mrb[0].mxu0
        %v866 = vadd.f32 %v670, %v865
        %867 = vdwg.mxu0
        %868 = vmatprep.subr.bf16.mxu0 %v625
        %869 = vmatpush1.bf16.msra.mxu0 %v624
        %870 = vmatprep.subr.bf16.mxu0 %v629
        %871 = vmatpush1.bf16.msra.mxu0 %v628
        %872 = vmatprep.subr.bf16.mxu0 0
        %873 = vmatpush1.bf16.msra.mxu0 0
        %874 = vmatprep.subr.bf16.mxu0 0
        %875 = vmatpush1.bf16.msra.mxu0 0
        %876 = vmatprep.subr.bf16.mxu0 0
        %877 = vmatpush1.bf16.msra.mxu0 0
        %878 = vmatprep.subr.bf16.mxu0 0
        %879 = vmatpush1.bf16.msra.mxu0 0
        %880 = vmatprep.subr.bf16.mxu0 0
        %881 = vmatpush1.bf16.msra.mxu0 0
        %882 = vmatprep.subr.bf16.mxu0 0
        %883 = vmatpush1.bf16.msra.mxu0 0
        %884 = vmatprep.subr.bf16.mxu0 0
        %885 = vmatpush1.bf16.msra.mxu0 0
        %886 = vmatprep.subr.bf16.mxu0 0
        %887 = vmatpush1.bf16.msra.mxu0 0
        %888 = vmatprep.subr.bf16.mxu0 0
        %889 = vmatpush1.bf16.msra.mxu0 0
        %890 = vmatprep.subr.bf16.mxu0 0
        %891 = vmatpush1.bf16.msra.mxu0 0
        %892 = vmatprep.subr.bf16.mxu0 0
        %893 = vmatpush1.bf16.msra.mxu0 0
        %894 = vmatprep.subr.bf16.mxu0 0
        %895 = vmatpush1.bf16.msra.mxu0 0
        %896 = vmatprep.subr.bf16.mxu0 0
        %897 = vmatpush1.bf16.msra.mxu0 0
        %898 = vmatprep.subr.bf16.mxu0 0
        %899 = vmatpush1.bf16.msra.mxu0 0
        %900 = vmatprep.mubr.bf16.mxu0 0
        %901 = vmatmul.mubr.bf16.gmra.mrb[0].mxu0 %v704
        %v902 = vpop.f32.mrb[0].mxu0
        %v903 = vadd.f32 %v850, %v902
        %v904 = vpop.f32.mrb[0].mxu0
        %v905 = vadd.f32 %v852, %v904
        %v906 = vpop.f32.mrb[0].mxu0
        %v907 = vadd.f32 %v854, %v906
        %v908 = vpop.f32.mrb[0].mxu0
        %v909 = vadd.f32 %v856, %v908
        %910 = vmatprep.mubr.bf16.mxu0 0
        %911 = vmatmul.mubr.bf16.gmra.mrb[0].mxu0 %v707
        %v912 = vpop.f32.mrb[0].mxu0
        %v913 = vadd.f32 %v860, %v912
        %v914 = vpop.f32.mrb[0].mxu0
        %v915 = vadd.f32 %v862, %v914
        %v916 = vpop.f32.mrb[0].mxu0
        %v917 = vadd.f32 %v864, %v916
        %v918 = vpop.f32.mrb[0].mxu0
        %v919 = vadd.f32 %v866, %v918
        %920 = vdwg.mxu0
        %921 = vmatprep.subr.bf16.mxu0 0
        %922 = vmatpush1.bf16.msra.mxu0 %v312
        %923 = vmatprep.subr.bf16.mxu0 0
        %924 = vmatpush1.bf16.msra.mxu0 %v317
        %925 = vmatprep.subr.bf16.mxu0 0
        %926 = vmatpush1.bf16.msra.mxu0 %v337
        %927 = vmatprep.subr.bf16.mxu0 0
        %928 = vmatpush1.bf16.msra.mxu0 %v347
        %929 = vmatprep.subr.bf16.mxu0 0
        %930 = vmatpush1.bf16.msra.mxu0 %v376
        %931 = vmatprep.subr.bf16.mxu0 0
        %932 = vmatpush1.bf16.msra.mxu0 %v386
        %933 = vmatprep.subr.bf16.mxu0 0
        %934 = vmatpush1.bf16.msra.mxu0 %v415
        %935 = vmatprep.subr.bf16.mxu0 0
        %936 = vmatpush1.bf16.msra.mxu0 %v425
        %937 = vmatprep.subr.bf16.mxu0 0
        %938 = vmatpush1.bf16.msra.mxu0 %v454
        %939 = vmatprep.subr.bf16.mxu0 0
        %940 = vmatpush1.bf16.msra.mxu0 %v464
        %941 = vmatprep.subr.bf16.mxu0 0
        %942 = vmatpush1.bf16.msra.mxu0 %v493
        %943 = vmatprep.subr.bf16.mxu0 0
        %944 = vmatpush1.bf16.msra.mxu0 %v503
        %945 = vmatprep.subr.bf16.mxu0 0
        %946 = vmatpush1.bf16.msra.mxu0 %v532
        %947 = vmatprep.subr.bf16.mxu0 0
        %948 = vmatpush1.bf16.msra.mxu0 %v542
        %949 = vmatprep.subr.bf16.mxu0 0
        %950 = vmatpush1.bf16.msra.mxu0 %v571
        %951 = vmatprep.subr.bf16.mxu0 0
        %952 = vmatpush1.bf16.msra.mxu0 %v581
        %953 = vmatprep.mubr.bf16.mxu0 %v693
        %954 = vmatmul.mubr.bf16.gmra.mrb[0].mxu0 %v692
        %v955 = vpop.f32.mrb[0].mxu0
        %v956 = vadd.f32 %v655, %v955
        %v957 = vpop.f32.mrb[0].mxu0
        %v958 = vpop.f32.mrb[0].mxu0
        %v959 = vadd.f32 %v660, %v958
        %v960 = vpop.f32.mrb[0].mxu0
        %961 = vmatprep.mubr.bf16.mxu0 %v696
        %962 = vmatmul.mubr.bf16.gmra.mrb[0].mxu0 %v695
        %v963 = vpop.f32.mrb[0].mxu0
        %v964 = vadd.f32 %v665, %v963
        %v965 = vpop.f32.mrb[0].mxu0
        %v966 = vpop.f32.mrb[0].mxu0
        %v967 = vadd.f32 %v670, %v966
        %v968 = vpop.f32.mrb[0].mxu0
        %969 = vdwg.mxu0
        %970 = vmatprep.subr.bf16.mxu0 0
        %971 = vmatpush1.bf16.msra.mxu0 %v610
        %972 = vmatprep.subr.bf16.mxu0 0
        %973 = vmatpush1.bf16.msra.mxu0 %v620
        %974 = vmatprep.subr.bf16.mxu0 0
        %975 = vmatpush1.bf16.msra.mxu0 0
        %976 = vmatprep.subr.bf16.mxu0 0
        %977 = vmatpush1.bf16.msra.mxu0 0
        %978 = vmatprep.subr.bf16.mxu0 0
        %979 = vmatpush1.bf16.msra.mxu0 0
        %980 = vmatprep.subr.bf16.mxu0 0
        %981 = vmatpush1.bf16.msra.mxu0 0
        %982 = vmatprep.subr.bf16.mxu0 0
        %983 = vmatpush1.bf16.msra.mxu0 0
        %984 = vmatprep.subr.bf16.mxu0 0
        %985 = vmatpush1.bf16.msra.mxu0 0
        %986 = vmatprep.subr.bf16.mxu0 0
        %987 = vmatpush1.bf16.msra.mxu0 0
        %988 = vmatprep.subr.bf16.mxu0 0
        %989 = vmatpush1.bf16.msra.mxu0 0
        %990 = vmatprep.subr.bf16.mxu0 0
        %991 = vmatpush1.bf16.msra.mxu0 0
        %992 = vmatprep.subr.bf16.mxu0 0
        %993 = vmatpush1.bf16.msra.mxu0 0
        %994 = vmatprep.subr.bf16.mxu0 0
        %995 = vmatpush1.bf16.msra.mxu0 0
        %996 = vmatprep.subr.bf16.mxu0 0
        %997 = vmatpush1.bf16.msra.mxu0 0
        %998 = vmatprep.subr.bf16.mxu0 0
        %999 = vmatpush1.bf16.msra.mxu0 0
        %1000 = vmatprep.subr.bf16.mxu0 0
        %1001 = vmatpush1.bf16.msra.mxu0 0
        %1002 = vmatprep.mubr.bf16.mxu0 0
        %1003 = vmatmul.mubr.bf16.gmra.mrb[0].mxu0 %v704
        %v1004 = vpop.f32.mrb[0].mxu0
        %v1005 = vadd.f32 %v956, %v1004
        %v1006 = vpop.f32.mrb[0].mxu0
        %v1007 = vpop.f32.mrb[0].mxu0
        %v1008 = vadd.f32 %v959, %v1007
        %v1009 = vpop.f32.mrb[0].mxu0
        %1010 = vmatprep.mubr.bf16.mxu0 0
        %1011 = vmatmul.mubr.bf16.gmra.mrb[0].mxu0 %v707
        %v1012 = vpop.f32.mrb[0].mxu0
        %v1013 = vadd.f32 %v964, %v1012
        %v1014 = vpop.f32.mrb[0].mxu0
        %v1015 = vpop.f32.mrb[0].mxu0
        %v1016 = vadd.f32 %v967, %v1015
        %v1017 = vpop.f32.mrb[0].mxu0
        %1018 = vdwg.mxu0
        %v1019 = vmax.f32 %v797, 0.0
        %v1020 = vmax.f32 %v799, 0.0
        %v1021 = vmax.f32 %v903, 0.0
        %v1022 = vmax.f32 %v905, 0.0
        %v1023 = vmax.f32 %v1005, 0.0
        %v1024 = vmax.f32 %v801, 0.0
        %v1025 = vmax.f32 %v803, 0.0
        %v1026 = vmax.f32 %v907, 0.0
        %v1027 = vmax.f32 %v909, 0.0
        %v1028 = vmax.f32 %v1008, 0.0
        %v1029 = vmax.f32 %v807, 0.0
        %v1030 = vmax.f32 %v809, 0.0
        %v1031 = vmax.f32 %v913, 0.0
        %v1032 = vmax.f32 %v915, 0.0
        %v1033 = vmax.f32 %v1013, 0.0
        %v1034 = vmax.f32 %v811, 0.0
        %v1035 = vmax.f32 %v813, 0.0
        %v1036 = vmax.f32 %v917, 0.0
        %v1037 = vmax.f32 %v919, 0.0
        %v1038 = vmax.f32 %v1016, 0.0
        %v1039 = vpack.c.bf16 %v1024, %v1019
        %v1040 = vpack.c.bf16 %v1025, %v1020
        %v1041 = vpack.c.bf16 %v1026, %v1021
        %v1042 = vpack.c.bf16 %v1027, %v1022
        %v1043 = vpack.c.bf16 %v1028, %v1023
        %v1044 = vpack.c.bf16 %v1034, %v1029
        %v1045 = vpack.c.bf16 %v1035, %v1030
        %v1046 = vpack.c.bf16 %v1036, %v1031
        %v1047 = vpack.c.bf16 %v1037, %v1032
        %v1048 = vpack.c.bf16 %v1038, %v1033
        %1057 = vrot.lane.b32.xlu0 %v1039, 127
        %v1058 = vpop.permute.xlu0 %1057
        %1059 = vrot.lane.b32.xlu0 %v1040, 127
        %v1060 = vpop.permute.xlu0 %1059
        %1061 = vrot.lane.b32.xlu0 %v1041, 127
        %v1062 = vpop.permute.xlu0 %1061
        %1063 = vrot.lane.b32.xlu0 %v1042, 127
        %v1064 = vpop.permute.xlu0 %1063
        %1065 = vrot.lane.b32.xlu0 %v1044, 127
        %v1066 = vpop.permute.xlu0 %1065
        %1067 = vrot.lane.b32.xlu0 %v1045, 127
        %v1068 = vpop.permute.xlu0 %1067
        %1069 = vrot.lane.b32.xlu0 %v1046, 127
        %v1070 = vpop.permute.xlu0 %1069
        %1071 = vrot.lane.b32.xlu0 %v1047, 127
        %v1072 = vpop.permute.xlu0 %1071
        %v1073 = vsel %vm348, %v1058, %v1060
        %v1074 = vsel %vm348, %v1060, %v1062
        %v1075 = vsel %vm348, %v1062, %v1064
        %v1076 = vsel %vm348, %v1066, %v1068
        %v1077 = vsel %vm348, %v1068, %v1070
        %v1078 = vsel %vm348, %v1070, %v1072
        %1087 = vrot.lane.b32.xlu0 %v1039, 126
        %v1088 = vpop.permute.xlu0 %1087
        %1089 = vrot.lane.b32.xlu0 %v1040, 126
        %v1090 = vpop.permute.xlu0 %1089
        %1091 = vrot.lane.b32.xlu0 %v1041, 126
        %v1092 = vpop.permute.xlu0 %1091
        %1093 = vrot.lane.b32.xlu0 %v1042, 126
        %v1094 = vpop.permute.xlu0 %1093
        %1095 = vrot.lane.b32.xlu0 %v1044, 126
        %v1096 = vpop.permute.xlu0 %1095
        %1097 = vrot.lane.b32.xlu0 %v1045, 126
        %v1098 = vpop.permute.xlu0 %1097
        %1099 = vrot.lane.b32.xlu0 %v1046, 126
        %v1100 = vpop.permute.xlu0 %1099
        %1101 = vrot.lane.b32.xlu0 %v1047, 126
        %v1102 = vpop.permute.xlu0 %1101
        %v1103 = vsel %vm387, %v1088, %v1090
        %v1104 = vsel %vm387, %v1090, %v1092
        %v1105 = vsel %vm387, %v1092, %v1094
        %v1106 = vsel %vm387, %v1096, %v1098
        %v1107 = vsel %vm387, %v1098, %v1100
        %v1108 = vsel %vm387, %v1100, %v1102
        %1117 = vrot.lane.b32.xlu0 %v1039, 104
        %v1118 = vpop.permute.xlu0 %1117
        %1119 = vrot.lane.b32.xlu0 %v1040, 104
        %v1120 = vpop.permute.xlu0 %1119
        %1121 = vrot.lane.b32.xlu0 %v1041, 104
        %v1122 = vpop.permute.xlu0 %1121
        %1123 = vrot.lane.b32.xlu0 %v1042, 104
        %v1124 = vpop.permute.xlu0 %1123
        %1125 = vrot.lane.b32.xlu0 %v1044, 104
        %v1126 = vpop.permute.xlu0 %1125
        %1127 = vrot.lane.b32.xlu0 %v1045, 104
        %v1128 = vpop.permute.xlu0 %1127
        %1129 = vrot.lane.b32.xlu0 %v1046, 104
        %v1130 = vpop.permute.xlu0 %1129
        %1131 = vrot.lane.b32.xlu0 %v1047, 104
        %v1132 = vpop.permute.xlu0 %1131
        %v1133 = vsel %vm426, %v1118, %v1120
        %v1134 = vsel %vm426, %v1120, %v1122
        %v1135 = vsel %vm426, %v1122, %v1124
        %v1136 = vsel %vm426, %v1126, %v1128
        %v1137 = vsel %vm426, %v1128, %v1130
        %v1138 = vsel %vm426, %v1130, %v1132
        %1147 = vrot.lane.b32.xlu0 %v1039, 103
        %v1148 = vpop.permute.xlu0 %1147
        %1149 = vrot.lane.b32.xlu0 %v1040, 103
        %v1150 = vpop.permute.xlu0 %1149
        %1151 = vrot.lane.b32.xlu0 %v1041, 103
        %v1152 = vpop.permute.xlu0 %1151
        %1153 = vrot.lane.b32.xlu0 %v1042, 103
        %v1154 = vpop.permute.xlu0 %1153
        %1155 = vrot.lane.b32.xlu0 %v1044, 103
        %v1156 = vpop.permute.xlu0 %1155
        %1157 = vrot.lane.b32.xlu0 %v1045, 103
        %v1158 = vpop.permute.xlu0 %1157
        %1159 = vrot.lane.b32.xlu0 %v1046, 103
        %v1160 = vpop.permute.xlu0 %1159
        %1161 = vrot.lane.b32.xlu0 %v1047, 103
        %v1162 = vpop.permute.xlu0 %1161
        %v1163 = vsel %vm465, %v1148, %v1150
        %v1164 = vsel %vm465, %v1150, %v1152
        %v1165 = vsel %vm465, %v1152, %v1154
        %v1166 = vsel %vm465, %v1156, %v1158
        %v1167 = vsel %vm465, %v1158, %v1160
        %v1168 = vsel %vm465, %v1160, %v1162
        %1177 = vrot.lane.b32.xlu0 %v1039, 102
        %v1178 = vpop.permute.xlu0 %1177
        %1179 = vrot.lane.b32.xlu0 %v1040, 102
        %v1180 = vpop.permute.xlu0 %1179
        %1181 = vrot.lane.b32.xlu0 %v1041, 102
        %v1182 = vpop.permute.xlu0 %1181
        %1183 = vrot.lane.b32.xlu0 %v1042, 102
        %v1184 = vpop.permute.xlu0 %1183
        %1185 = vrot.lane.b32.xlu0 %v1044, 102
        %v1186 = vpop.permute.xlu0 %1185
        %1187 = vrot.lane.b32.xlu0 %v1045, 102
        %v1188 = vpop.permute.xlu0 %1187
        %1189 = vrot.lane.b32.xlu0 %v1046, 102
        %v1190 = vpop.permute.xlu0 %1189
        %1191 = vrot.lane.b32.xlu0 %v1047, 102
        %v1192 = vpop.permute.xlu0 %1191
        %v1193 = vsel %vm504, %v1178, %v1180
        %v1194 = vsel %vm504, %v1180, %v1182
        %v1195 = vsel %vm504, %v1182, %v1184
        %v1196 = vsel %vm504, %v1186, %v1188
        %v1197 = vsel %vm504, %v1188, %v1190
        %v1198 = vsel %vm504, %v1190, %v1192
        %1207 = vrot.lane.b32.xlu0 %v1039, 80
        %v1208 = vpop.permute.xlu0 %1207
        %1209 = vrot.lane.b32.xlu0 %v1040, 80
        %v1210 = vpop.permute.xlu0 %1209
        %1211 = vrot.lane.b32.xlu0 %v1041, 80
        %v1212 = vpop.permute.xlu0 %1211
        %1213 = vrot.lane.b32.xlu0 %v1042, 80
        %v1214 = vpop.permute.xlu0 %1213
        %1215 = vrot.lane.b32.xlu0 %v1044, 80
        %v1216 = vpop.permute.xlu0 %1215
        %1217 = vrot.lane.b32.xlu0 %v1045, 80
        %v1218 = vpop.permute.xlu0 %1217
        %1219 = vrot.lane.b32.xlu0 %v1046, 80
        %v1220 = vpop.permute.xlu0 %1219
        %1221 = vrot.lane.b32.xlu0 %v1047, 80
        %v1222 = vpop.permute.xlu0 %1221
        %v1223 = vsel %vm543, %v1208, %v1210
        %v1224 = vsel %vm543, %v1210, %v1212
        %v1225 = vsel %vm543, %v1212, %v1214
        %v1226 = vsel %vm543, %v1216, %v1218
        %v1227 = vsel %vm543, %v1218, %v1220
        %v1228 = vsel %vm543, %v1220, %v1222
        %1239 = vrot.lane.b32.xlu0 %v1039, 79
        %v1240 = vpop.permute.xlu0 %1239
        %1241 = vrot.lane.b32.xlu0 %v1040, 79
        %v1242 = vpop.permute.xlu0 %1241
        %1243 = vrot.lane.b32.xlu0 %v1041, 79
        %v1244 = vpop.permute.xlu0 %1243
        %1245 = vrot.lane.b32.xlu0 %v1042, 79
        %v1246 = vpop.permute.xlu0 %1245
        %1247 = vrot.lane.b32.xlu0 %v1043, 79
        %v1248 = vpop.permute.xlu0 %1247
        %1249 = vrot.lane.b32.xlu0 %v1044, 79
        %v1250 = vpop.permute.xlu0 %1249
        %1251 = vrot.lane.b32.xlu0 %v1045, 79
        %v1252 = vpop.permute.xlu0 %1251
        %1253 = vrot.lane.b32.xlu0 %v1046, 79
        %v1254 = vpop.permute.xlu0 %1253
        %1255 = vrot.lane.b32.xlu0 %v1047, 79
        %v1256 = vpop.permute.xlu0 %1255
        %1257 = vrot.lane.b32.xlu0 %v1048, 79
        %v1258 = vpop.permute.xlu0 %1257
        %v1259 = vsel %vm582, %v1240, %v1242
        %v1260 = vsel %vm582, %v1242, %v1244
        %v1261 = vsel %vm582, %v1244, %v1246
        %v1262 = vsel %vm582, %v1246, %v1248
        %v1263 = vsel %vm582, %v1250, %v1252
        %v1264 = vsel %vm582, %v1252, %v1254
        %v1265 = vsel %vm582, %v1254, %v1256
        %v1266 = vsel %vm582, %v1256, %v1258
        %1275 = vrot.lane.b32.xlu0 %v1039, 78
        %v1276 = vpop.permute.xlu0 %1275
        %1277 = vrot.lane.b32.xlu0 %v1040, 78
        %v1278 = vpop.permute.xlu0 %1277
        %1279 = vrot.lane.b32.xlu0 %v1041, 78
        %v1280 = vpop.permute.xlu0 %1279
        %1281 = vrot.lane.b32.xlu0 %v1042, 78
        %v1282 = vpop.permute.xlu0 %1281
        %1283 = vrot.lane.b32.xlu0 %v1043, 78
        %v1284 = vpop.permute.xlu0 %1283
        %1285 = vrot.lane.b32.xlu0 %v1044, 78
        %v1286 = vpop.permute.xlu0 %1285
        %1287 = vrot.lane.b32.xlu0 %v1045, 78
        %v1288 = vpop.permute.xlu0 %1287
        %1289 = vrot.lane.b32.xlu0 %v1046, 78
        %v1290 = vpop.permute.xlu0 %1289
        %1291 = vrot.lane.b32.xlu0 %v1047, 78
        %v1292 = vpop.permute.xlu0 %1291
        %1293 = vrot.lane.b32.xlu0 %v1048, 78
        %v1294 = vpop.permute.xlu0 %1293
        %v1295 = vsel %vm621, %v1276, %v1278
        %v1296 = vsel %vm621, %v1278, %v1280
        %v1297 = vsel %vm621, %v1280, %v1282
        %v1298 = vsel %vm621, %v1282, %v1284
        %v1299 = vsel %vm621, %v1286, %v1288
        %v1300 = vsel %vm621, %v1288, %v1290
        %v1301 = vsel %vm621, %v1290, %v1292
        %v1302 = vsel %vm621, %v1292, %v1294
        %s1311 = scalar_lea.vmem [#allocation4], 48
        %v1312 = vld [vmem:[%s1311] sm:$0xff]
        %v1313 = vld [vmem:[%s1311 + $0x8] sm:$0xf]
        %v1314 = vld [vmem:[%s1311 + $0xc] sm:$0xff]
        %v1315 = vld [vmem:[%s1311 + $0x14] sm:$0xf]
        %v1316 = vld [vmem:[%s1311 + $0x18] sm:$0xff]
        %v1317 = vld [vmem:[%s1311 + $0x20] sm:$0xf]
        %v1318 = vld [vmem:[%s1311 + $0x24] sm:$0xff]
        %v1319 = vld [vmem:[%s1311 + $0x2c] sm:$0xf]
        %s1320 = scalar_lea.vmem %s2, 32
        %v1321 = vld [vmem:[%s1320] sm:$0xff]
        %v1322 = vld [vmem:[%s1320 + $0x8] sm:$0xff]
        %v1323 = vld [vmem:[%s1320 + $0x10] sm:$0xff]
        %v1324 = vld [vmem:[%s1320 + $0x18] sm:$0xff]
        %1326 = vset.pattern.permute.xlu0 0
        %1327 = vperm.xlu0 %1326, %v1321
        %v1328 = vpop.permute.xlu0 %1327
        %1331 = vset.pattern.permute.xlu0 0
        %1332 = vperm.xlu0 %1331, %v1322
        %v1333 = vpop.permute.xlu0 %1332
        %1336 = vset.pattern.permute.xlu0 0
        %1337 = vperm.xlu0 %1336, %v1323
        %v1338 = vpop.permute.xlu0 %1337
        %1341 = vset.pattern.permute.xlu0 0
        %1342 = vperm.xlu0 %1341, %v1324
        %v1343 = vpop.permute.xlu0 %1342
        %v1353 = vunpack.c.l.b16 %v1312
        %v1354 = vunpack.c.h.b16 %v1312
        %v1355 = vunpack.c.l.b16 %v1313
        %v1356 = vunpack.c.l.b16 %v1314
        %v1357 = vunpack.c.h.b16 %v1314
        %v1358 = vunpack.c.l.b16 %v1315
        %v1359 = vunpack.c.l.b16 %v1316
        %v1360 = vunpack.c.h.b16 %v1316
        %v1361 = vunpack.c.l.b16 %v1317
        %v1362 = vunpack.c.l.b16 %v1318
        %v1363 = vunpack.c.h.b16 %v1318
        %v1364 = vunpack.c.l.b16 %v1319
        %v1365 = vpack.c.b16 %v1356, %v1353
        %v1366 = vpack.c.b16 %v1357, %v1354
        %v1367 = vpack.c.b16 %v1358, %v1355
        %v1368 = vpack.c.b16 %v1362, %v1359
        %v1369 = vpack.c.b16 %v1363, %v1360
        %v1370 = vpack.c.b16 %v1364, %v1361
        %v1376 = vsel %vm702, %v1367, 0
        %v1379 = vsel %vm702, %v1370, 0
        %1381 = vmatprep.subr.bf16.mxu0 %v1040
        %1382 = vmatpush1.bf16.msra.mxu0 %v1039
        %1383 = vmatprep.subr.bf16.mxu0 %v1045
        %1384 = vmatpush1.bf16.msra.mxu0 %v1044
        %1385 = vmatprep.subr.bf16.mxu0 %v1074
        %1386 = vmatpush1.bf16.msra.mxu0 %v1073
        %1387 = vmatprep.subr.bf16.mxu0 %v1077
        %1388 = vmatpush1.bf16.msra.mxu0 %v1076
        %1389 = vmatprep.subr.bf16.mxu0 %v1104
        %1390 = vmatpush1.bf16.msra.mxu0 %v1103
        %1391 = vmatprep.subr.bf16.mxu0 %v1107
        %1392 = vmatpush1.bf16.msra.mxu0 %v1106
        %1393 = vmatprep.subr.bf16.mxu0 %v1134
        %1394 = vmatpush1.bf16.msra.mxu0 %v1133
        %1395 = vmatprep.subr.bf16.mxu0 %v1137
        %1396 = vmatpush1.bf16.msra.mxu0 %v1136
        %1397 = vmatprep.subr.bf16.mxu0 %v1164
        %1398 = vmatpush1.bf16.msra.mxu0 %v1163
        %1399 = vmatprep.subr.bf16.mxu0 %v1167
        %1400 = vmatpush1.bf16.msra.mxu0 %v1166
        %1401 = vmatprep.subr.bf16.mxu0 %v1194
        %1402 = vmatpush1.bf16.msra.mxu0 %v1193
        %1403 = vmatprep.subr.bf16.mxu0 %v1197
        %1404 = vmatpush1.bf16.msra.mxu0 %v1196
        %1405 = vmatprep.subr.bf16.mxu0 %v1224
        %1406 = vmatpush1.bf16.msra.mxu0 %v1223
        %1407 = vmatprep.subr.bf16.mxu0 %v1227
        %1408 = vmatpush1.bf16.msra.mxu0 %v1226
        %1409 = vmatprep.subr.bf16.mxu0 %v1260
        %1410 = vmatpush1.bf16.msra.mxu0 %v1259
        %1411 = vmatprep.subr.bf16.mxu0 %v1264
        %1412 = vmatpush1.bf16.msra.mxu0 %v1263
        %1413 = vmatprep.mubr.bf16.mxu0 %v1366
        %1414 = vmatmul.mubr.bf16.gmra.mrb[0].mxu0 %v1365
        %v1415 = vpop.f32.mrb[0].mxu0
        %v1416 = vadd.f32 %v1328, %v1415
        %v1417 = vpop.f32.mrb[0].mxu0
        %v1418 = vadd.f32 %v1328, %v1417
        %v1419 = vpop.f32.mrb[0].mxu0
        %v1420 = vadd.f32 %v1333, %v1419
        %v1421 = vpop.f32.mrb[0].mxu0
        %v1422 = vadd.f32 %v1333, %v1421
        %1423 = vmatprep.mubr.bf16.mxu0 %v1369
        %1424 = vmatmul.mubr.bf16.gmra.mrb[0].mxu0 %v1368
        %v1425 = vpop.f32.mrb[0].mxu0
        %v1426 = vadd.f32 %v1338, %v1425
        %v1427 = vpop.f32.mrb[0].mxu0
        %v1428 = vadd.f32 %v1338, %v1427
        %v1429 = vpop.f32.mrb[0].mxu0
        %v1430 = vadd.f32 %v1343, %v1429
        %v1431 = vpop.f32.mrb[0].mxu0
        %v1432 = vadd.f32 %v1343, %v1431
        %1433 = vdwg.mxu0
        %1434 = vmatprep.subr.bf16.mxu0 %v1296
        %1435 = vmatpush1.bf16.msra.mxu0 %v1295
        %1436 = vmatprep.subr.bf16.mxu0 %v1300
        %1437 = vmatpush1.bf16.msra.mxu0 %v1299
        %1438 = vmatprep.subr.bf16.mxu0 0
        %1439 = vmatpush1.bf16.msra.mxu0 0
        %1440 = vmatprep.subr.bf16.mxu0 0
        %1441 = vmatpush1.bf16.msra.mxu0 0
        %1442 = vmatprep.subr.bf16.mxu0 0
        %1443 = vmatpush1.bf16.msra.mxu0 0
        %1444 = vmatprep.subr.bf16.mxu0 0
        %1445 = vmatpush1.bf16.msra.mxu0 0
        %1446 = vmatprep.subr.bf16.mxu0 0
        %1447 = vmatpush1.bf16.msra.mxu0 0
        %1448 = vmatprep.subr.bf16.mxu0 0
        %1449 = vmatpush1.bf16.msra.mxu0 0
        %1450 = vmatprep.subr.bf16.mxu0 0
        %1451 = vmatpush1.bf16.msra.mxu0 0
        %1452 = vmatprep.subr.bf16.mxu0 0
        %1453 = vmatpush1.bf16.msra.mxu0 0
        %1454 = vmatprep.subr.bf16.mxu0 0
        %1455 = vmatpush1.bf16.msra.mxu0 0
        %1456 = vmatprep.subr.bf16.mxu0 0
        %1457 = vmatpush1.bf16.msra.mxu0 0
        %1458 = vmatprep.subr.bf16.mxu0 0
        %1459 = vmatpush1.bf16.msra.mxu0 0
        %1460 = vmatprep.subr.bf16.mxu0 0
        %1461 = vmatpush1.bf16.msra.mxu0 0
        %1462 = vmatprep.subr.bf16.mxu0 0
        %1463 = vmatpush1.bf16.msra.mxu0 0
        %1464 = vmatprep.subr.bf16.mxu0 0
        %1465 = vmatpush1.bf16.msra.mxu0 0
        %1466 = vmatprep.mubr.bf16.mxu0 0
        %1467 = vmatmul.mubr.bf16.gmra.mrb[0].mxu0 %v1376
        %v1468 = vpop.f32.mrb[0].mxu0
        %v1469 = vadd.f32 %v1416, %v1468
        %v1470 = vpop.f32.mrb[0].mxu0
        %v1471 = vadd.f32 %v1418, %v1470
        %v1472 = vpop.f32.mrb[0].mxu0
        %v1473 = vadd.f32 %v1420, %v1472
        %v1474 = vpop.f32.mrb[0].mxu0
        %v1475 = vadd.f32 %v1422, %v1474
        %1476 = vmatprep.mubr.bf16.mxu0 0
        %1477 = vmatmul.mubr.bf16.gmra.mrb[0].mxu0 %v1379
        %v1478 = vpop.f32.mrb[0].mxu0
        %v1479 = vadd.f32 %v1426, %v1478
        %v1480 = vpop.f32.mrb[0].mxu0
        %v1481 = vadd.f32 %v1428, %v1480
        %v1482 = vpop.f32.mrb[0].mxu0
        %v1483 = vadd.f32 %v1430, %v1482
        %v1484 = vpop.f32.mrb[0].mxu0
        %v1485 = vadd.f32 %v1432, %v1484
        %1486 = vdwg.mxu0
        %1487 = vmatprep.subr.bf16.mxu0 %v1042
        %1488 = vmatpush1.bf16.msra.mxu0 %v1041
        %1489 = vmatprep.subr.bf16.mxu0 %v1047
        %1490 = vmatpush1.bf16.msra.mxu0 %v1046
        %1491 = vmatprep.subr.bf16.mxu0 %v1064
        %1492 = vmatpush1.bf16.msra.mxu0 %v1075
        %1493 = vmatprep.subr.bf16.mxu0 %v1072
        %1494 = vmatpush1.bf16.msra.mxu0 %v1078
        %1495 = vmatprep.subr.bf16.mxu0 %v1094
        %1496 = vmatpush1.bf16.msra.mxu0 %v1105
        %1497 = vmatprep.subr.bf16.mxu0 %v1102
        %1498 = vmatpush1.bf16.msra.mxu0 %v1108
        %1499 = vmatprep.subr.bf16.mxu0 %v1124
        %1500 = vmatpush1.bf16.msra.mxu0 %v1135
        %1501 = vmatprep.subr.bf16.mxu0 %v1132
        %1502 = vmatpush1.bf16.msra.mxu0 %v1138
        %1503 = vmatprep.subr.bf16.mxu0 %v1154
        %1504 = vmatpush1.bf16.msra.mxu0 %v1165
        %1505 = vmatprep.subr.bf16.mxu0 %v1162
        %1506 = vmatpush1.bf16.msra.mxu0 %v1168
        %1507 = vmatprep.subr.bf16.mxu0 %v1184
        %1508 = vmatpush1.bf16.msra.mxu0 %v1195
        %1509 = vmatprep.subr.bf16.mxu0 %v1192
        %1510 = vmatpush1.bf16.msra.mxu0 %v1198
        %1511 = vmatprep.subr.bf16.mxu0 %v1214
        %1512 = vmatpush1.bf16.msra.mxu0 %v1225
        %1513 = vmatprep.subr.bf16.mxu0 %v1222
        %1514 = vmatpush1.bf16.msra.mxu0 %v1228
        %1515 = vmatprep.subr.bf16.mxu0 %v1262
        %1516 = vmatpush1.bf16.msra.mxu0 %v1261
        %1517 = vmatprep.subr.bf16.mxu0 %v1266
        %1518 = vmatpush1.bf16.msra.mxu0 %v1265
        %1519 = vmatprep.mubr.bf16.mxu0 %v1366
        %1520 = vmatmul.mubr.bf16.gmra.mrb[0].mxu0 %v1365
        %v1521 = vpop.f32.mrb[0].mxu0
        %v1522 = vadd.f32 %v1328, %v1521
        %v1523 = vpop.f32.mrb[0].mxu0
        %v1524 = vadd.f32 %v1328, %v1523
        %v1525 = vpop.f32.mrb[0].mxu0
        %v1526 = vadd.f32 %v1333, %v1525
        %v1527 = vpop.f32.mrb[0].mxu0
        %v1528 = vadd.f32 %v1333, %v1527
        %1529 = vmatprep.mubr.bf16.mxu0 %v1369
        %1530 = vmatmul.mubr.bf16.gmra.mrb[0].mxu0 %v1368
        %v1531 = vpop.f32.mrb[0].mxu0
        %v1532 = vadd.f32 %v1338, %v1531
        %v1533 = vpop.f32.mrb[0].mxu0
        %v1534 = vadd.f32 %v1338, %v1533
        %v1535 = vpop.f32.mrb[0].mxu0
        %v1536 = vadd.f32 %v1343, %v1535
        %v1537 = vpop.f32.mrb[0].mxu0
        %v1538 = vadd.f32 %v1343, %v1537
        %1539 = vdwg.mxu0
        %1540 = vmatprep.subr.bf16.mxu0 %v1298
        %1541 = vmatpush1.bf16.msra.mxu0 %v1297
        %1542 = vmatprep.subr.bf16.mxu0 %v1302
        %1543 = vmatpush1.bf16.msra.mxu0 %v1301
        %1544 = vmatprep.subr.bf16.mxu0 0
        %1545 = vmatpush1.bf16.msra.mxu0 0
        %1546 = vmatprep.subr.bf16.mxu0 0
        %1547 = vmatpush1.bf16.msra.mxu0 0
        %1548 = vmatprep.subr.bf16.mxu0 0
        %1549 = vmatpush1.bf16.msra.mxu0 0
        %1550 = vmatprep.subr.bf16.mxu0 0
        %1551 = vmatpush1.bf16.msra.mxu0 0
        %1552 = vmatprep.subr.bf16.mxu0 0
        %1553 = vmatpush1.bf16.msra.mxu0 0
        %1554 = vmatprep.subr.bf16.mxu0 0
        %1555 = vmatpush1.bf16.msra.mxu0 0
        %1556 = vmatprep.subr.bf16.mxu0 0
        %1557 = vmatpush1.bf16.msra.mxu0 0
        %1558 = vmatprep.subr.bf16.mxu0 0
        %1559 = vmatpush1.bf16.msra.mxu0 0
        %1560 = vmatprep.subr.bf16.mxu0 0
        %1561 = vmatpush1.bf16.msra.mxu0 0
        %1562 = vmatprep.subr.bf16.mxu0 0
        %1563 = vmatpush1.bf16.msra.mxu0 0
        %1564 = vmatprep.subr.bf16.mxu0 0
        %1565 = vmatpush1.bf16.msra.mxu0 0
        %1566 = vmatprep.subr.bf16.mxu0 0
        %1567 = vmatpush1.bf16.msra.mxu0 0
        %1568 = vmatprep.subr.bf16.mxu0 0
        %1569 = vmatpush1.bf16.msra.mxu0 0
        %1570 = vmatprep.subr.bf16.mxu0 0
        %1571 = vmatpush1.bf16.msra.mxu0 0
        %1572 = vmatprep.mubr.bf16.mxu0 0
        %1573 = vmatmul.mubr.bf16.gmra.mrb[0].mxu0 %v1376
        %v1574 = vpop.f32.mrb[0].mxu0
        %v1575 = vadd.f32 %v1522, %v1574
        %v1576 = vpop.f32.mrb[0].mxu0
        %v1577 = vadd.f32 %v1524, %v1576
        %v1578 = vpop.f32.mrb[0].mxu0
        %v1579 = vadd.f32 %v1526, %v1578
        %v1580 = vpop.f32.mrb[0].mxu0
        %v1581 = vadd.f32 %v1528, %v1580
        %1582 = vmatprep.mubr.bf16.mxu0 0
        %1583 = vmatmul.mubr.bf16.gmra.mrb[0].mxu0 %v1379
        %v1584 = vpop.f32.mrb[0].mxu0
        %v1585 = vadd.f32 %v1532, %v1584
        %v1586 = vpop.f32.mrb[0].mxu0
        %v1587 = vadd.f32 %v1534, %v1586
        %v1588 = vpop.f32.mrb[0].mxu0
        %v1589 = vadd.f32 %v1536, %v1588
        %v1590 = vpop.f32.mrb[0].mxu0
        %v1591 = vadd.f32 %v1538, %v1590
        %1592 = vdwg.mxu0
        %v1593 = vmax.f32 %v1469, 0.0
        %v1594 = vmax.f32 %v1471, 0.0
        %v1595 = vmax.f32 %v1575, 0.0
        %v1596 = vmax.f32 %v1577, 0.0
        %v1597 = vmax.f32 %v1473, 0.0
        %v1598 = vmax.f32 %v1475, 0.0
        %v1599 = vmax.f32 %v1579, 0.0
        %v1600 = vmax.f32 %v1581, 0.0
        %v1601 = vmax.f32 %v1479, 0.0
        %v1602 = vmax.f32 %v1481, 0.0
        %v1603 = vmax.f32 %v1585, 0.0
        %v1604 = vmax.f32 %v1587, 0.0
        %v1605 = vmax.f32 %v1483, 0.0
        %v1606 = vmax.f32 %v1485, 0.0
        %v1607 = vmax.f32 %v1589, 0.0
        %v1608 = vmax.f32 %v1591, 0.0
        %v1609 = vpack.c.bf16 %v1597, %v1593
        %v1610 = vpack.c.bf16 %v1598, %v1594
        %v1611 = vpack.c.bf16 %v1599, %v1595
        %v1612 = vpack.c.bf16 %v1600, %v1596
        %v1613 = vpack.c.bf16 %v1605, %v1601
        %v1614 = vpack.c.bf16 %v1606, %v1602
        %v1615 = vpack.c.bf16 %v1607, %v1603
        %v1616 = vpack.c.bf16 %v1608, %v1604
        %1625 = vrot.lane.b32.xlu0 %v1609, 127
        %v1626 = vpop.permute.xlu0 %1625
        %1627 = vrot.lane.b32.xlu0 %v1610, 127
        %v1628 = vpop.permute.xlu0 %1627
        %1629 = vrot.lane.b32.xlu0 %v1611, 127
        %v1630 = vpop.permute.xlu0 %1629
        %1631 = vrot.lane.b32.xlu0 %v1612, 127
        %v1632 = vpop.permute.xlu0 %1631
        %1633 = vrot.lane.b32.xlu0 %v1613, 127
        %v1634 = vpop.permute.xlu0 %1633
        %1635 = vrot.lane.b32.xlu0 %v1614, 127
        %v1636 = vpop.permute.xlu0 %1635
        %1637 = vrot.lane.b32.xlu0 %v1615, 127
        %v1638 = vpop.permute.xlu0 %1637
        %1639 = vrot.lane.b32.xlu0 %v1616, 127
        %v1640 = vpop.permute.xlu0 %1639
        %v1641 = vsel %vm348, %v1626, %v1628
        %v1642 = vsel %vm348, %v1628, %v1630
        %v1643 = vsel %vm348, %v1630, %v1632
        %v1644 = vsel %vm348, %v1634, %v1636
        %v1645 = vsel %vm348, %v1636, %v1638
        %v1646 = vsel %vm348, %v1638, %v1640
        %1655 = vrot.lane.b32.xlu0 %v1609, 126
        %v1656 = vpop.permute.xlu0 %1655
        %1657 = vrot.lane.b32.xlu0 %v1610, 126
        %v1658 = vpop.permute.xlu0 %1657
        %1659 = vrot.lane.b32.xlu0 %v1611, 126
        %v1660 = vpop.permute.xlu0 %1659
        %1661 = vrot.lane.b32.xlu0 %v1612, 126
        %v1662 = vpop.permute.xlu0 %1661
        %1663 = vrot.lane.b32.xlu0 %v1613, 126
        %v1664 = vpop.permute.xlu0 %1663
        %1665 = vrot.lane.b32.xlu0 %v1614, 126
        %v1666 = vpop.permute.xlu0 %1665
        %1667 = vrot.lane.b32.xlu0 %v1615, 126
        %v1668 = vpop.permute.xlu0 %1667
        %1669 = vrot.lane.b32.xlu0 %v1616, 126
        %v1670 = vpop.permute.xlu0 %1669
        %v1671 = vsel %vm387, %v1656, %v1658
        %v1672 = vsel %vm387, %v1658, %v1660
        %v1673 = vsel %vm387, %v1660, %v1662
        %v1674 = vsel %vm387, %v1664, %v1666
        %v1675 = vsel %vm387, %v1666, %v1668
        %v1676 = vsel %vm387, %v1668, %v1670
        %1685 = vrot.lane.b32.xlu0 %v1609, 104
        %v1686 = vpop.permute.xlu0 %1685
        %1687 = vrot.lane.b32.xlu0 %v1610, 104
        %v1688 = vpop.permute.xlu0 %1687
        %1689 = vrot.lane.b32.xlu0 %v1611, 104
        %v1690 = vpop.permute.xlu0 %1689
        %1691 = vrot.lane.b32.xlu0 %v1612, 104
        %v1692 = vpop.permute.xlu0 %1691
        %1693 = vrot.lane.b32.xlu0 %v1613, 104
        %v1694 = vpop.permute.xlu0 %1693
        %1695 = vrot.lane.b32.xlu0 %v1614, 104
        %v1696 = vpop.permute.xlu0 %1695
        %1697 = vrot.lane.b32.xlu0 %v1615, 104
        %v1698 = vpop.permute.xlu0 %1697
        %1699 = vrot.lane.b32.xlu0 %v1616, 104
        %v1700 = vpop.permute.xlu0 %1699
        %v1701 = vsel %vm426, %v1686, %v1688
        %v1702 = vsel %vm426, %v1688, %v1690
        %v1703 = vsel %vm426, %v1690, %v1692
        %v1704 = vsel %vm426, %v1694, %v1696
        %v1705 = vsel %vm426, %v1696, %v1698
        %v1706 = vsel %vm426, %v1698, %v1700
        %1715 = vrot.lane.b32.xlu0 %v1609, 103
        %v1716 = vpop.permute.xlu0 %1715
        %1717 = vrot.lane.b32.xlu0 %v1610, 103
        %v1718 = vpop.permute.xlu0 %1717
        %1719 = vrot.lane.b32.xlu0 %v1611, 103
        %v1720 = vpop.permute.xlu0 %1719
        %1721 = vrot.lane.b32.xlu0 %v1612, 103
        %v1722 = vpop.permute.xlu0 %1721
        %1723 = vrot.lane.b32.xlu0 %v1613, 103
        %v1724 = vpop.permute.xlu0 %1723
        %1725 = vrot.lane.b32.xlu0 %v1614, 103
        %v1726 = vpop.permute.xlu0 %1725
        %1727 = vrot.lane.b32.xlu0 %v1615, 103
        %v1728 = vpop.permute.xlu0 %1727
        %1729 = vrot.lane.b32.xlu0 %v1616, 103
        %v1730 = vpop.permute.xlu0 %1729
        %v1731 = vsel %vm465, %v1716, %v1718
        %v1732 = vsel %vm465, %v1718, %v1720
        %v1733 = vsel %vm465, %v1720, %v1722
        %v1734 = vsel %vm465, %v1724, %v1726
        %v1735 = vsel %vm465, %v1726, %v1728
        %v1736 = vsel %vm465, %v1728, %v1730
        %1745 = vrot.lane.b32.xlu0 %v1609, 102
        %v1746 = vpop.permute.xlu0 %1745
        %1747 = vrot.lane.b32.xlu0 %v1610, 102
        %v1748 = vpop.permute.xlu0 %1747
        %1749 = vrot.lane.b32.xlu0 %v1611, 102
        %v1750 = vpop.permute.xlu0 %1749
        %1751 = vrot.lane.b32.xlu0 %v1612, 102
        %v1752 = vpop.permute.xlu0 %1751
        %1753 = vrot.lane.b32.xlu0 %v1613, 102
        %v1754 = vpop.permute.xlu0 %1753
        %1755 = vrot.lane.b32.xlu0 %v1614, 102
        %v1756 = vpop.permute.xlu0 %1755
        %1757 = vrot.lane.b32.xlu0 %v1615, 102
        %v1758 = vpop.permute.xlu0 %1757
        %1759 = vrot.lane.b32.xlu0 %v1616, 102
        %v1760 = vpop.permute.xlu0 %1759
        %v1761 = vsel %vm504, %v1746, %v1748
        %v1762 = vsel %vm504, %v1748, %v1750
        %v1763 = vsel %vm504, %v1750, %v1752
        %v1764 = vsel %vm504, %v1754, %v1756
        %v1765 = vsel %vm504, %v1756, %v1758
        %v1766 = vsel %vm504, %v1758, %v1760
        %1775 = vrot.lane.b32.xlu0 %v1609, 80
        %v1776 = vpop.permute.xlu0 %1775
        %1777 = vrot.lane.b32.xlu0 %v1610, 80
        %v1778 = vpop.permute.xlu0 %1777
        %1779 = vrot.lane.b32.xlu0 %v1611, 80
        %v1780 = vpop.permute.xlu0 %1779
        %1781 = vrot.lane.b32.xlu0 %v1612, 80
        %v1782 = vpop.permute.xlu0 %1781
        %1783 = vrot.lane.b32.xlu0 %v1613, 80
        %v1784 = vpop.permute.xlu0 %1783
        %1785 = vrot.lane.b32.xlu0 %v1614, 80
        %v1786 = vpop.permute.xlu0 %1785
        %1787 = vrot.lane.b32.xlu0 %v1615, 80
        %v1788 = vpop.permute.xlu0 %1787
        %1789 = vrot.lane.b32.xlu0 %v1616, 80
        %v1790 = vpop.permute.xlu0 %1789
        %v1791 = vsel %vm543, %v1776, %v1778
        %v1792 = vsel %vm543, %v1778, %v1780
        %v1793 = vsel %vm543, %v1780, %v1782
        %v1794 = vsel %vm543, %v1784, %v1786
        %v1795 = vsel %vm543, %v1786, %v1788
        %v1796 = vsel %vm543, %v1788, %v1790
        %1805 = vrot.lane.b32.xlu0 %v1609, 79
        %v1806 = vpop.permute.xlu0 %1805
        %1807 = vrot.lane.b32.xlu0 %v1610, 79
        %v1808 = vpop.permute.xlu0 %1807
        %1809 = vrot.lane.b32.xlu0 %v1611, 79
        %v1810 = vpop.permute.xlu0 %1809
        %1811 = vrot.lane.b32.xlu0 %v1612, 79
        %v1812 = vpop.permute.xlu0 %1811
        %1813 = vrot.lane.b32.xlu0 %v1613, 79
        %v1814 = vpop.permute.xlu0 %1813
        %1815 = vrot.lane.b32.xlu0 %v1614, 79
        %v1816 = vpop.permute.xlu0 %1815
        %1817 = vrot.lane.b32.xlu0 %v1615, 79
        %v1818 = vpop.permute.xlu0 %1817
        %1819 = vrot.lane.b32.xlu0 %v1616, 79
        %v1820 = vpop.permute.xlu0 %1819
        %v1821 = vsel %vm582, %v1806, %v1808
        %v1822 = vsel %vm582, %v1808, %v1810
        %v1823 = vsel %vm582, %v1810, %v1812
        %v1824 = vsel %vm582, %v1814, %v1816
        %v1825 = vsel %vm582, %v1816, %v1818
        %v1826 = vsel %vm582, %v1818, %v1820
        %1835 = vrot.lane.b32.xlu0 %v1609, 78
        %v1836 = vpop.permute.xlu0 %1835
        %1837 = vrot.lane.b32.xlu0 %v1610, 78
        %v1838 = vpop.permute.xlu0 %1837
        %1839 = vrot.lane.b32.xlu0 %v1611, 78
        %v1840 = vpop.permute.xlu0 %1839
        %1841 = vrot.lane.b32.xlu0 %v1612, 78
        %v1842 = vpop.permute.xlu0 %1841
        %1843 = vrot.lane.b32.xlu0 %v1613, 78
        %v1844 = vpop.permute.xlu0 %1843
        %1845 = vrot.lane.b32.xlu0 %v1614, 78
        %v1846 = vpop.permute.xlu0 %1845
        %1847 = vrot.lane.b32.xlu0 %v1615, 78
        %v1848 = vpop.permute.xlu0 %1847
        %1849 = vrot.lane.b32.xlu0 %v1616, 78
        %v1850 = vpop.permute.xlu0 %1849
        %v1851 = vsel %vm621, %v1836, %v1838
        %v1852 = vsel %vm621, %v1838, %v1840
        %v1853 = vsel %vm621, %v1840, %v1842
        %v1854 = vsel %vm621, %v1844, %v1846
        %v1855 = vsel %vm621, %v1846, %v1848
        %v1856 = vsel %vm621, %v1848, %v1850
        %s1865 = scalar_lea.vmem [#allocation4], 96
        %v1866 = vld [vmem:[%s1865] sm:$0xff]
        %v1867 = vld [vmem:[%s1865 + $0x8] sm:$0xf]
        %v1868 = vld [vmem:[%s1865 + $0xc] sm:$0xff]
        %v1869 = vld [vmem:[%s1865 + $0x14] sm:$0xf]
        %v1870 = vld [vmem:[%s1865 + $0x18] sm:$0xff]
        %v1871 = vld [vmem:[%s1865 + $0x20] sm:$0xf]
        %v1872 = vld [vmem:[%s1865 + $0x24] sm:$0xff]
        %v1873 = vld [vmem:[%s1865 + $0x2c] sm:$0xf]
        %s1874 = scalar_lea.vmem %s2, 64
        %v1875 = vld [vmem:[%s1874] sm:$0xff]
        %v1876 = vld [vmem:[%s1874 + $0x8] sm:$0xff]
        %v1877 = vld [vmem:[%s1874 + $0x10] sm:$0xff]
        %v1878 = vld [vmem:[%s1874 + $0x18] sm:$0xff]
        %1880 = vset.pattern.permute.xlu0 0
        %1881 = vperm.xlu0 %1880, %v1875
        %v1882 = vpop.permute.xlu0 %1881
        %1885 = vset.pattern.permute.xlu0 0
        %1886 = vperm.xlu0 %1885, %v1876
        %v1887 = vpop.permute.xlu0 %1886
        %1890 = vset.pattern.permute.xlu0 0
        %1891 = vperm.xlu0 %1890, %v1877
        %v1892 = vpop.permute.xlu0 %1891
        %1895 = vset.pattern.permute.xlu0 0
        %1896 = vperm.xlu0 %1895, %v1878
        %v1897 = vpop.permute.xlu0 %1896
        %v1907 = vunpack.c.l.b16 %v1866
        %v1908 = vunpack.c.h.b16 %v1866
        %v1909 = vunpack.c.l.b16 %v1867
        %v1910 = vunpack.c.l.b16 %v1868
        %v1911 = vunpack.c.h.b16 %v1868
        %v1912 = vunpack.c.l.b16 %v1869
        %v1913 = vunpack.c.l.b16 %v1870
        %v1914 = vunpack.c.h.b16 %v1870
        %v1915 = vunpack.c.l.b16 %v1871
        %v1916 = vunpack.c.l.b16 %v1872
        %v1917 = vunpack.c.h.b16 %v1872
        %v1918 = vunpack.c.l.b16 %v1873
        %v1919 = vpack.c.b16 %v1910, %v1907
        %v1920 = vpack.c.b16 %v1911, %v1908
        %v1921 = vpack.c.b16 %v1912, %v1909
        %v1922 = vpack.c.b16 %v1916, %v1913
        %v1923 = vpack.c.b16 %v1917, %v1914
        %v1924 = vpack.c.b16 %v1918, %v1915
        %v1930 = vsel %vm702, %v1921, 0
        %v1933 = vsel %vm702, %v1924, 0
        %1935 = vmatprep.subr.bf16.mxu0 %v1610
        %1936 = vmatpush1.bf16.msra.mxu0 %v1609
        %1937 = vmatprep.subr.bf16.mxu0 %v1614
        %1938 = vmatpush1.bf16.msra.mxu0 %v1613
        %1939 = vmatprep.subr.bf16.mxu0 %v1642
        %1940 = vmatpush1.bf16.msra.mxu0 %v1641
        %1941 = vmatprep.subr.bf16.mxu0 %v1645
        %1942 = vmatpush1.bf16.msra.mxu0 %v1644
        %1943 = vmatprep.subr.bf16.mxu0 %v1672
        %1944 = vmatpush1.bf16.msra.mxu0 %v1671
        %1945 = vmatprep.subr.bf16.mxu0 %v1675
        %1946 = vmatpush1.bf16.msra.mxu0 %v1674
        %1947 = vmatprep.subr.bf16.mxu0 %v1702
        %1948 = vmatpush1.bf16.msra.mxu0 %v1701
        %1949 = vmatprep.subr.bf16.mxu0 %v1705
        %1950 = vmatpush1.bf16.msra.mxu0 %v1704
        %1951 = vmatprep.subr.bf16.mxu0 %v1732
        %1952 = vmatpush1.bf16.msra.mxu0 %v1731
        %1953 = vmatprep.subr.bf16.mxu0 %v1735
        %1954 = vmatpush1.bf16.msra.mxu0 %v1734
        %1955 = vmatprep.subr.bf16.mxu0 %v1762
        %1956 = vmatpush1.bf16.msra.mxu0 %v1761
        %1957 = vmatprep.subr.bf16.mxu0 %v1765
        %1958 = vmatpush1.bf16.msra.mxu0 %v1764
        %1959 = vmatprep.subr.bf16.mxu0 %v1792
        %1960 = vmatpush1.bf16.msra.mxu0 %v1791
        %1961 = vmatprep.subr.bf16.mxu0 %v1795
        %1962 = vmatpush1.bf16.msra.mxu0 %v1794
        %1963 = vmatprep.subr.bf16.mxu0 %v1822
        %1964 = vmatpush1.bf16.msra.mxu0 %v1821
        %1965 = vmatprep.subr.bf16.mxu0 %v1825
        %1966 = vmatpush1.bf16.msra.mxu0 %v1824
        %1967 = vmatprep.mubr.bf16.mxu0 %v1920
        %1968 = vmatmul.mubr.bf16.gmra.mrb[0].mxu0 %v1919
        %v1969 = vpop.f32.mrb[0].mxu0
        %v1970 = vadd.f32 %v1882, %v1969
        %v1971 = vpop.f32.mrb[0].mxu0
        %v1972 = vadd.f32 %v1882, %v1971
        %v1973 = vpop.f32.mrb[0].mxu0
        %v1974 = vadd.f32 %v1887, %v1973
        %v1975 = vpop.f32.mrb[0].mxu0
        %v1976 = vadd.f32 %v1887, %v1975
        %1977 = vmatprep.mubr.bf16.mxu0 %v1923
        %1978 = vmatmul.mubr.bf16.gmra.mrb[0].mxu0 %v1922
        %v1979 = vpop.f32.mrb[0].mxu0
        %v1980 = vadd.f32 %v1892, %v1979
        %v1981 = vpop.f32.mrb[0].mxu0
        %v1982 = vadd.f32 %v1892, %v1981
        %v1983 = vpop.f32.mrb[0].mxu0
        %v1984 = vadd.f32 %v1897, %v1983
        %v1985 = vpop.f32.mrb[0].mxu0
        %v1986 = vadd.f32 %v1897, %v1985
        %1987 = vdwg.mxu0
        %1988 = vmatprep.subr.bf16.mxu0 %v1852
        %1989 = vmatpush1.bf16.msra.mxu0 %v1851
        %1990 = vmatprep.subr.bf16.mxu0 %v1855
        %1991 = vmatpush1.bf16.msra.mxu0 %v1854
        %1992 = vmatprep.subr.bf16.mxu0 0
        %1993 = vmatpush1.bf16.msra.mxu0 0
        %1994 = vmatprep.subr.bf16.mxu0 0
        %1995 = vmatpush1.bf16.msra.mxu0 0
        %1996 = vmatprep.subr.bf16.mxu0 0
        %1997 = vmatpush1.bf16.msra.mxu0 0
        %1998 = vmatprep.subr.bf16.mxu0 0
        %1999 = vmatpush1.bf16.msra.mxu0 0
        %2000 = vmatprep.subr.bf16.mxu0 0
        %2001 = vmatpush1.bf16.msra.mxu0 0
        %2002 = vmatprep.subr.bf16.mxu0 0
        %2003 = vmatpush1.bf16.msra.mxu0 0
        %2004 = vmatprep.subr.bf16.mxu0 0
        %2005 = vmatpush1.bf16.msra.mxu0 0
        %2006 = vmatprep.subr.bf16.mxu0 0
        %2007 = vmatpush1.bf16.msra.mxu0 0
        %2008 = vmatprep.subr.bf16.mxu0 0
        %2009 = vmatpush1.bf16.msra.mxu0 0
        %2010 = vmatprep.subr.bf16.mxu0 0
        %2011 = vmatpush1.bf16.msra.mxu0 0
        %2012 = vmatprep.subr.bf16.mxu0 0
        %2013 = vmatpush1.bf16.msra.mxu0 0
        %2014 = vmatprep.subr.bf16.mxu0 0
        %2015 = vmatpush1.bf16.msra.mxu0 0
        %2016 = vmatprep.subr.bf16.mxu0 0
        %2017 = vmatpush1.bf16.msra.mxu0 0
        %2018 = vmatprep.subr.bf16.mxu0 0
        %2019 = vmatpush1.bf16.msra.mxu0 0
        %2020 = vmatprep.mubr.bf16.mxu0 0
        %2021 = vmatmul.mubr.bf16.gmra.mrb[0].mxu0 %v1930
        %v2022 = vpop.f32.mrb[0].mxu0
        %v2023 = vadd.f32 %v1970, %v2022
        %v2024 = vpop.f32.mrb[0].mxu0
        %v2025 = vadd.f32 %v1972, %v2024
        %v2026 = vpop.f32.mrb[0].mxu0
        %v2027 = vadd.f32 %v1974, %v2026
        %v2028 = vpop.f32.mrb[0].mxu0
        %v2029 = vadd.f32 %v1976, %v2028
        %2030 = vmatprep.mubr.bf16.mxu0 0
        %2031 = vmatmul.mubr.bf16.gmra.mrb[0].mxu0 %v1933
        %v2032 = vpop.f32.mrb[0].mxu0
        %v2033 = vadd.f32 %v1980, %v2032
        %v2034 = vpop.f32.mrb[0].mxu0
        %v2035 = vadd.f32 %v1982, %v2034
        %v2036 = vpop.f32.mrb[0].mxu0
        %v2037 = vadd.f32 %v1984, %v2036
        %v2038 = vpop.f32.mrb[0].mxu0
        %v2039 = vadd.f32 %v1986, %v2038
        %2040 = vdwg.mxu0
        %2041 = vmatprep.subr.bf16.mxu0 %v1612
        %2042 = vmatpush1.bf16.msra.mxu0 %v1611
        %2043 = vmatprep.subr.bf16.mxu0 %v1616
        %2044 = vmatpush1.bf16.msra.mxu0 %v1615
        %2045 = vmatprep.subr.bf16.mxu0 %v1632
        %2046 = vmatpush1.bf16.msra.mxu0 %v1643
        %2047 = vmatprep.subr.bf16.mxu0 %v1640
        %2048 = vmatpush1.bf16.msra.mxu0 %v1646
        %2049 = vmatprep.subr.bf16.mxu0 %v1662
        %2050 = vmatpush1.bf16.msra.mxu0 %v1673
        %2051 = vmatprep.subr.bf16.mxu0 %v1670
        %2052 = vmatpush1.bf16.msra.mxu0 %v1676
        %2053 = vmatprep.subr.bf16.mxu0 %v1692
        %2054 = vmatpush1.bf16.msra.mxu0 %v1703
        %2055 = vmatprep.subr.bf16.mxu0 %v1700
        %2056 = vmatpush1.bf16.msra.mxu0 %v1706
        %2057 = vmatprep.subr.bf16.mxu0 %v1722
        %2058 = vmatpush1.bf16.msra.mxu0 %v1733
        %2059 = vmatprep.subr.bf16.mxu0 %v1730
        %2060 = vmatpush1.bf16.msra.mxu0 %v1736
        %2061 = vmatprep.subr.bf16.mxu0 %v1752
        %2062 = vmatpush1.bf16.msra.mxu0 %v1763
        %2063 = vmatprep.subr.bf16.mxu0 %v1760
        %2064 = vmatpush1.bf16.msra.mxu0 %v1766
        %2065 = vmatprep.subr.bf16.mxu0 %v1782
        %2066 = vmatpush1.bf16.msra.mxu0 %v1793
        %2067 = vmatprep.subr.bf16.mxu0 %v1790
        %2068 = vmatpush1.bf16.msra.mxu0 %v1796
        %2069 = vmatprep.subr.bf16.mxu0 %v1812
        %2070 = vmatpush1.bf16.msra.mxu0 %v1823
        %2071 = vmatprep.subr.bf16.mxu0 %v1820
        %2072 = vmatpush1.bf16.msra.mxu0 %v1826
        %2073 = vmatprep.mubr.bf16.mxu0 %v1920
        %2074 = vmatmul.mubr.bf16.gmra.mrb[0].mxu0 %v1919
        %v2075 = vpop.f32.mrb[0].mxu0
        %v2076 = vadd.f32 %v1882, %v2075
        %v2077 = vpop.f32.mrb[0].mxu0
        %v2078 = vadd.f32 %v1882, %v2077
        %v2079 = vpop.f32.mrb[0].mxu0
        %v2080 = vadd.f32 %v1887, %v2079
        %v2081 = vpop.f32.mrb[0].mxu0
        %v2082 = vadd.f32 %v1887, %v2081
        %2083 = vmatprep.mubr.bf16.mxu0 %v1923
        %2084 = vmatmul.mubr.bf16.gmra.mrb[0].mxu0 %v1922
        %v2085 = vpop.f32.mrb[0].mxu0
        %v2086 = vadd.f32 %v1892, %v2085
        %v2087 = vpop.f32.mrb[0].mxu0
        %v2088 = vadd.f32 %v1892, %v2087
        %v2089 = vpop.f32.mrb[0].mxu0
        %v2090 = vadd.f32 %v1897, %v2089
        %v2091 = vpop.f32.mrb[0].mxu0
        %v2092 = vadd.f32 %v1897, %v2091
        %2093 = vdwg.mxu0
        %2094 = vmatprep.subr.bf16.mxu0 %v1842
        %2095 = vmatpush1.bf16.msra.mxu0 %v1853
        %2096 = vmatprep.subr.bf16.mxu0 %v1850
        %2097 = vmatpush1.bf16.msra.mxu0 %v1856
        %2098 = vmatprep.subr.bf16.mxu0 0
        %2099 = vmatpush1.bf16.msra.mxu0 0
        %2100 = vmatprep.subr.bf16.mxu0 0
        %2101 = vmatpush1.bf16.msra.mxu0 0
        %2102 = vmatprep.subr.bf16.mxu0 0
        %2103 = vmatpush1.bf16.msra.mxu0 0
        %2104 = vmatprep.subr.bf16.mxu0 0
        %2105 = vmatpush1.bf16.msra.mxu0 0
        %2106 = vmatprep.subr.bf16.mxu0 0
        %2107 = vmatpush1.bf16.msra.mxu0 0
        %2108 = vmatprep.subr.bf16.mxu0 0
        %2109 = vmatpush1.bf16.msra.mxu0 0
        %2110 = vmatprep.subr.bf16.mxu0 0
        %2111 = vmatpush1.bf16.msra.mxu0 0
        %2112 = vmatprep.subr.bf16.mxu0 0
        %2113 = vmatpush1.bf16.msra.mxu0 0
        %2114 = vmatprep.subr.bf16.mxu0 0
        %2115 = vmatpush1.bf16.msra.mxu0 0
        %2116 = vmatprep.subr.bf16.mxu0 0
        %2117 = vmatpush1.bf16.msra.mxu0 0
        %2118 = vmatprep.subr.bf16.mxu0 0
        %2119 = vmatpush1.bf16.msra.mxu0 0
        %2120 = vmatprep.subr.bf16.mxu0 0
        %2121 = vmatpush1.bf16.msra.mxu0 0
        %2122 = vmatprep.subr.bf16.mxu0 0
        %2123 = vmatpush1.bf16.msra.mxu0 0
        %2124 = vmatprep.subr.bf16.mxu0 0
        %2125 = vmatpush1.bf16.msra.mxu0 0
        %2126 = vmatprep.mubr.bf16.mxu0 0
        %2127 = vmatmul.mubr.bf16.gmra.mrb[0].mxu0 %v1930
        %v2128 = vpop.f32.mrb[0].mxu0
        %v2129 = vadd.f32 %v2076, %v2128
        %v2130 = vpop.f32.mrb[0].mxu0
        %v2131 = vadd.f32 %v2078, %v2130
        %v2132 = vpop.f32.mrb[0].mxu0
        %v2133 = vadd.f32 %v2080, %v2132
        %v2134 = vpop.f32.mrb[0].mxu0
        %v2135 = vadd.f32 %v2082, %v2134
        %2136 = vmatprep.mubr.bf16.mxu0 0
        %2137 = vmatmul.mubr.bf16.gmra.mrb[0].mxu0 %v1933
        %v2138 = vpop.f32.mrb[0].mxu0
        %v2139 = vadd.f32 %v2086, %v2138
        %v2140 = vpop.f32.mrb[0].mxu0
        %v2141 = vadd.f32 %v2088, %v2140
        %v2142 = vpop.f32.mrb[0].mxu0
        %v2143 = vadd.f32 %v2090, %v2142
        %v2144 = vpop.f32.mrb[0].mxu0
        %v2145 = vadd.f32 %v2092, %v2144
        %2146 = vdwg.mxu0
        %v2147 = vmax.f32 %v2023, 0.0
        %v2148 = vmax.f32 %v2025, 0.0
        %v2149 = vmax.f32 %v2129, 0.0
        %v2150 = vmax.f32 %v2131, 0.0
        %v2151 = vmax.f32 %v2027, 0.0
        %v2152 = vmax.f32 %v2029, 0.0
        %v2153 = vmax.f32 %v2133, 0.0
        %v2154 = vmax.f32 %v2135, 0.0
        %v2155 = vmax.f32 %v2033, 0.0
        %v2156 = vmax.f32 %v2035, 0.0
        %v2157 = vmax.f32 %v2139, 0.0
        %v2158 = vmax.f32 %v2141, 0.0
        %v2159 = vmax.f32 %v2037, 0.0
        %v2160 = vmax.f32 %v2039, 0.0
        %v2161 = vmax.f32 %v2143, 0.0
        %v2162 = vmax.f32 %v2145, 0.0
        %v2163 = vpack.c.bf16 %v2151, %v2147
        %v2164 = vpack.c.bf16 %v2152, %v2148
        %v2165 = vpack.c.bf16 %v2153, %v2149
        %v2166 = vpack.c.bf16 %v2154, %v2150
        %v2167 = vpack.c.bf16 %v2159, %v2155
        %v2168 = vpack.c.bf16 %v2160, %v2156
        %v2169 = vpack.c.bf16 %v2161, %v2157
        %v2170 = vpack.c.bf16 %v2162, %v2158
        %v2171 = vld [vmem:[%s3] sm:$0x7]
        %v2172 = vld [vmem:[%s4] sm:$0x3f]
        %2174 = vset.pattern.permute.xlu0 0
        %2175 = vperm.xlu0 %2174, %v2172
        %v2176 = vpop.permute.xlu0 %2175
        %v2179 = vsel %vm702, %v2171, 0
        %2181 = vmatprep.subr.bf16.mxu0 %v2164
        %2182 = vmatpush1.bf16.msra.mxu0 %v2163
        %2183 = vmatprep.subr.bf16.mxu0 %v2168
        %2184 = vmatpush1.bf16.msra.mxu0 %v2167
        %2185 = vmatprep.subr.bf16.mxu0 0
        %2186 = vmatpush1.bf16.msra.mxu0 0
        %2187 = vmatprep.subr.bf16.mxu0 0
        %2188 = vmatpush1.bf16.msra.mxu0 0
        %2189 = vmatprep.subr.bf16.mxu0 0
        %2190 = vmatpush1.bf16.msra.mxu0 0
        %2191 = vmatprep.subr.bf16.mxu0 0
        %2192 = vmatpush1.bf16.msra.mxu0 0
        %2193 = vmatprep.subr.bf16.mxu0 0
        %2194 = vmatpush1.bf16.msra.mxu0 0
        %2195 = vmatprep.subr.bf16.mxu0 0
        %2196 = vmatpush1.bf16.msra.mxu0 0
        %2197 = vmatprep.subr.bf16.mxu0 0
        %2198 = vmatpush1.bf16.msra.mxu0 0
        %2199 = vmatprep.subr.bf16.mxu0 0
        %2200 = vmatpush1.bf16.msra.mxu0 0
        %2201 = vmatprep.subr.bf16.mxu0 0
        %2202 = vmatpush1.bf16.msra.mxu0 0
        %2203 = vmatprep.subr.bf16.mxu0 0
        %2204 = vmatpush1.bf16.msra.mxu0 0
        %2205 = vmatprep.subr.bf16.mxu0 0
        %2206 = vmatpush1.bf16.msra.mxu0 0
        %2207 = vmatprep.subr.bf16.mxu0 0
        %2208 = vmatpush1.bf16.msra.mxu0 0
        %2209 = vmatprep.subr.bf16.mxu0 0
        %2210 = vmatpush1.bf16.msra.mxu0 0
        %2211 = vmatprep.subr.bf16.mxu0 0
        %2212 = vmatpush1.bf16.msra.mxu0 0
        %2213 = vmatprep.mubr.bf16.mxu0 0
        %2214 = vmatmul.mubr.bf16.gmra.mrb[0].mxu0 %v2179
        %v2215 = vpop.f32.mrb[0].mxu0
        %v2216 = vadd.f32 %v2176, %v2215
        %v2217 = vpop.f32.mrb[0].mxu0
        %v2218 = vadd.f32 %v2176, %v2217
        %v2219 = vpop.f32.mrb[0].mxu0
        %v2220 = vpop.f32.mrb[0].mxu0
        %2221 = vdwg.mxu0
        %2222 = vmatprep.subr.bf16.mxu0 %v2166
        %2223 = vmatpush1.bf16.msra.mxu0 %v2165
        %2224 = vmatprep.subr.bf16.mxu0 %v2170
        %2225 = vmatpush1.bf16.msra.mxu0 %v2169
        %2226 = vmatprep.subr.bf16.mxu0 0
        %2227 = vmatpush1.bf16.msra.mxu0 0
        %2228 = vmatprep.subr.bf16.mxu0 0
        %2229 = vmatpush1.bf16.msra.mxu0 0
        %2230 = vmatprep.subr.bf16.mxu0 0
        %2231 = vmatpush1.bf16.msra.mxu0 0
        %2232 = vmatprep.subr.bf16.mxu0 0
        %2233 = vmatpush1.bf16.msra.mxu0 0
        %2234 = vmatprep.subr.bf16.mxu0 0
        %2235 = vmatpush1.bf16.msra.mxu0 0
        %2236 = vmatprep.subr.bf16.mxu0 0
        %2237 = vmatpush1.bf16.msra.mxu0 0
        %2238 = vmatprep.subr.bf16.mxu0 0
        %2239 = vmatpush1.bf16.msra.mxu0 0
        %2240 = vmatprep.subr.bf16.mxu0 0
        %2241 = vmatpush1.bf16.msra.mxu0 0
        %2242 = vmatprep.subr.bf16.mxu0 0
        %2243 = vmatpush1.bf16.msra.mxu0 0
        %2244 = vmatprep.subr.bf16.mxu0 0
        %2245 = vmatpush1.bf16.msra.mxu0 0
        %2246 = vmatprep.subr.bf16.mxu0 0
        %2247 = vmatpush1.bf16.msra.mxu0 0
        %2248 = vmatprep.subr.bf16.mxu0 0
        %2249 = vmatpush1.bf16.msra.mxu0 0
        %2250 = vmatprep.subr.bf16.mxu0 0
        %2251 = vmatpush1.bf16.msra.mxu0 0
        %2252 = vmatprep.subr.bf16.mxu0 0
        %2253 = vmatpush1.bf16.msra.mxu0 0
        %2254 = vmatprep.mubr.bf16.mxu0 0
        %2255 = vmatmul.mubr.bf16.gmra.mrb[0].mxu0 %v2179
        %v2256 = vpop.f32.mrb[0].mxu0
        %v2257 = vadd.f32 %v2176, %v2256
        %v2258 = vpop.f32.mrb[0].mxu0
        %v2259 = vadd.f32 %v2176, %v2258
        %v2260 = vpop.f32.mrb[0].mxu0
        %v2261 = vpop.f32.mrb[0].mxu0
        %2262 = vdwg.mxu0
        %2263 = vst [vmem:[%s286] sm:$0x3] %v2216
        %2264 = vst [vmem:[%s286 + $0x8] sm:$0x3] %v2218
        %2265 = vst [vmem:[%s286 + $0x10] sm:$0x3] %v2257
        %vm2266 = vcmask 189440
        %2267 = vst.msk [vmem:[%s286 + $0x18] sm:$0x3] %vm2266, %v2259
        %v2268 = vmin.f32 %v2216, 80.0
        %v2269 = vmin.f32 %v2218, 80.0
        %v2270 = vmin.f32 %v2257, 80.0
        %v2271 = vmin.f32 %v2259, 80.0
        %v2272 = vmul.f32 %v2268, 1.442695
        %v2273 = vpow.pop %v2272
        %v2274 = vmul.f32 %v2269, 1.442695
        %v2275 = vpow.pop %v2274
        %v2276 = vmul.f32 %v2270, 1.442695
        %v2277 = vpow.pop %v2276
        %v2278 = vmul.f32 %v2271, 1.442695
        %v2279 = vpow.pop %v2278
        %v2280 = vadd.f32 %v2273, 8.0
        %v2281 = vadd.f32 %v2275, 8.0
        %v2282 = vadd.f32 %v2277, 8.0
        %v2283 = vadd.f32 %v2279, 8.0
        %v2284 = vlaneseq
        %v2285 = vshrl.u32 %v2284, 7
        %vm2286 = vcmp.lt.s32.totalorder %v2285, 2
        %v2287 = vsel %vm2286, -1.0, 1.0
        %v2288 = vld [vmem:[%s5] sm:$0xff]
        %v2289 = vld [vmem:[%s5 + $0x8] sm:$0xff]
        %v2294 = vrot.slane %v2280, 2
        %v2295 = vrot.slane %v2281, 2
        %v2296 = vrot.slane %v2282, 2
        %v2297 = vrot.slane %v2283, 2
        %v2302 = vmul.f32 %v2287, %v2294
        %v2303 = vmul.f32 %v2287, %v2295
        %v2304 = vmul.f32 %v2287, %v2296
        %v2305 = vmul.f32 %v2287, %v2297
        %v2310 = vcombine.low %v2302, %v2303
        %v2311 = vcombine.low %v2304, %v2305
        %v2314 = vadd.f32 %v2288, %v2310
        %v2315 = vadd.f32 %v2289, %v2311
        %v2318 = vcombine.high %v2314, %v2314
        %v2319 = vcombine.high %v2315, %v2315
        %v2320 = vrot.slane %v2314, 6
        %v2321 = vrot.slane %v2318, 6
        %v2322 = vrot.slane %v2315, 6
        %v2323 = vrot.slane %v2319, 6
        %2328 = vst [vmem:[%s286] sm:$0x3c] %v2320
        %2329 = vst [vmem:[%s286 + $0x8] sm:$0x3c] %v2321
        %2330 = vst [vmem:[%s286 + $0x10] sm:$0x3c] %v2322
        %vm2331 = vcmask 193538
        %2332 = vst.msk [vmem:[%s286 + $0x18] sm:$0x3c] %vm2331, %v2323
        %p2333 = scmp.lt.s32.totalorder %s21, 1
        %s2334 = scalar_select %p2333, %s21, 1
        %s2335 = smul.addr %s2334, 4
        %s2336 = smul.addr %s2335, 8
        %s2337 = scalar_lea.vmem %s6, %s2336
        // Predicated region
        $region53: #{tpu_custom_call.1} parent=43 // pred_check
          %p2338 = pneg %p170
        $region54: #{tpu_custom_call.1} parent=43 // pred_check_branch
          %2340 = sbr.rel (%p2338) target = $region56
        $region55: #{tpu_custom_call.1} parent=43 // pred_region
          _
        $region56: #{tpu_custom_call.1} parent=43 // pred_fallthru
          _
      $region44: #{tpu_custom_call.1} parent=5 // pred_fallthru
        _
      %p2341 = scmp.le.s32.totalorder 2, %s16
      // Predicated region
      $region57: #{tpu_custom_call.1} parent=5 // pred_check
        %p2342 = pneg %p2341
      $region58: #{tpu_custom_call.1} parent=5 // pred_check_branch
        %2344 = sbr.rel (%p2342) target = $region60
      $region59: #{tpu_custom_call.1} parent=5 // pred_region
        %s2345 = ssub.s32 %s16, 2
        // Predicated region
        $region61: #{tpu_custom_call.1} parent=59 // pred_check
          %p2346 = pneg %p176
        $region62: #{tpu_custom_call.1} parent=59 // pred_check_branch
          %2348 = sbr.rel (%p2346) target = $region64
        $region63: #{tpu_custom_call.1} parent=59 // pred_region
          %p2349 = scmp.lt.s32.totalorder %s22, 1
          %s2350 = scalar_select %p2349, %s22, 1
          %s2351 = smul.addr %s2350, 4
          %s2352 = smul.addr %s2351, 8
          %s2353 = scalar_lea.vmem %s6, %s2352
        $region64: #{tpu_custom_call.1} parent=59 // pred_fallthru
          _
      $region60: #{tpu_custom_call.1} parent=5 // pred_fallthru
        _
    $region6: #{tpu_custom_call.1} parent=1 // loop_footer
      %s20 = sadd.s32 1, %s16
    $region7: #{tpu_custom_call.1} parent=1 // loop_footer_branch
      %15 = sbr.rel target = $region3
    $region8: #{tpu_custom_call.1} parent=1 // loop_exit
      _
    %2354 = vsyncpa [#allocation3], 1
    %s2355 = scalar_lea.sflag [#allocation3], 1
    %2356 = vsyncpa %s2355, 1
    %2357 = vsyncpa [#allocation5], 1

</llo_original>
